<compile_context>
chip_gen: v5e
topology: v5e:2x2
jax: 0.10.0
libtpu: 0.0.40
codegen_flags: <defaults>
</compile_context>

<pallas_src>
import jax
import jax.numpy as jnp
from jax.experimental import pallas as pl
from jax.experimental.pallas import tpu as pltpu

# TB % 512 == 0 keeps the (TB//64, 128) output slab block (8,128)-aligned.
_TILE_QUANTUM = 512


def _round_up(n, m):
    return ((n + m - 1) // m) * m


def _choose_tile(batch, block_b):
    """Batch tile: multiple of 512, <= block_b, and split into >= 2 grid steps
    whenever the batch is large enough (keeps both v7x TensorCores busy)."""
    block_b = max(_TILE_QUANTUM, (block_b // _TILE_QUANTUM) * _TILE_QUANTUM)
    target_steps = max(2, int(pl.cdiv(batch, block_b)))
    tile = _round_up(int(pl.cdiv(batch, target_steps)), _TILE_QUANTUM)
    return int(min(tile, block_b))


def _make_kernel(use_bf16, tb, lane_dense):
    cdtype = jnp.bfloat16 if use_bf16 else jnp.float32
    # Note: for bit-exact f32 matmuls pass precision=jax.lax.Precision.HIGHEST;
    # default MXU precision is well inside the tolerance used below.

    def kernel(x_ref, w1_ref, b1_ref, w2_ref, b2_ref, w3_ref, b3_ref, o_ref):
        # Layer 1: Linear(44, 64) + ReLU  (MXU matmul, f32 accumulate).
        x = x_ref[...].astype(cdtype)
        h1 = jnp.dot(x, w1_ref[...], preferred_element_type=jnp.float32)
        h1 = jnp.maximum(h1 + b1_ref[...], 0.0)            # b1 is (1, 64), f32

        # Layer 2: Linear(64, 32) + ReLU.
        h2 = jnp.dot(h1.astype(cdtype), w2_ref[...],
                     preferred_element_type=jnp.float32)
        h2 = jnp.maximum(h2 + b2_ref[...], 0.0)

        # Layer 3: Linear(32, 2) + Sigmoid.
        h3 = jnp.dot(h2.astype(cdtype), w3_ref[...],
                     preferred_element_type=jnp.float32)
        p = jax.nn.sigmoid(h3 + b3_ref[...])

        if lane_dense:
            # Row-major (TB, 2) -> (TB//64, 128): a few vregs of relayout work
            # on an otherwise idle slot; replaces 2/128-lane masked stores and
            # a 64x lane-padded output buffer with dense vst + dense writeback.
            o_ref[...] = p.reshape(tb // 64, 128).astype(o_ref.dtype)
        else:
            o_ref[...] = p.astype(o_ref.dtype)

    return kernel


def _pallas_forward(x, w1, b1, w2, b2, w3, b3, *, tb, grid_steps, use_bf16,
                    lane_dense, vmem_limit):
    feat = x.shape[1]

    def resident(a):  # weights/biases stay VMEM-resident across all steps
        return pl.BlockSpec(a.shape, lambda i: (0, 0))

    if lane_dense:
        out_shape = jax.ShapeDtypeStruct((grid_steps * (tb // 64), 128),
                                         jnp.float32)
        out_spec = pl.BlockSpec((tb // 64, 128), lambda i: (i, 0))
    else:
        out_shape = jax.ShapeDtypeStruct((grid_steps * tb, 2), jnp.float32)
        out_spec = pl.BlockSpec((tb, 2), lambda i: (i, 0))

    return pl.pallas_call(
        _make_kernel(use_bf16, tb, lane_dense),
        out_shape=out_shape,
        grid_spec=pltpu.PrefetchScalarGridSpec(
            num_scalar_prefetch=0,
            grid=(grid_steps,),
            in_specs=[
                pl.BlockSpec((tb, feat), lambda i: (i, 0)),   # streamed x tile
                resident(w1), resident(b1),
                resident(w2), resident(b2),
                resident(w3), resident(b3),
            ],
            out_specs=out_spec,
        ),
        compiler_params=pltpu.CompilerParams(
            dimension_semantics=("parallel",),     # megacore split on v7x
            vmem_limit_bytes=vmem_limit,
        ),
    )(x, w1, b1, w2, b2, w3, b3)


def meta_classifier_forward(x, params, *, block_b=8192, use_bf16=True):
    """x: (B, 44) float32 -> (B, 2) float32 probabilities (sigmoid outputs)."""
    w1, b1, w2, b2, w3, b3 = params
    batch, _ = x.shape

    tb = _choose_tile(batch, block_b)
    grid_steps = int(pl.cdiv(batch, tb))

    # Tiny batches only: pad up to one tile (a few KiB).  Large batches stream
    # unpadded; the partial trailing block is masked by Pallas and its garbage
    # rows fall into output rows >= batch, sliced off below.
    if batch < tb:
        x = jnp.pad(x, ((0, tb - batch), (0, 0)))

    if use_bf16:
        w1, w2, w3 = (w.astype(jnp.bfloat16) for w in (w1, w2, w3))

    # Scoped-VMEM ask derived from the tile (double-buffered x tile plus
    # lane-padded f32/bf16 intermediates), capped well under v7x's 64 MiB.
    vmem_limit = int(min(48 * 1024 * 1024, 8 * 1024 * 1024 + tb * 4096))

    kwargs = dict(tb=tb, grid_steps=grid_steps, use_bf16=use_bf16,
                  vmem_limit=vmem_limit)
    try:
        slab = _pallas_forward(x, w1, b1, w2, b2, w3, b3,
                               lane_dense=True, **kwargs)
        out = slab.reshape(-1, 2)              # free contiguous reshape
    except Exception:
        # TODO(synk): drop once every deployed Mosaic lowers the
        # (TB, 2) -> (TB//64, 128) minor-dim-merging reshape.
        out = _pallas_forward(x, w1, b1, w2, b2, w3, b3,
                              lane_dense=False, **kwargs)

    return out[:batch] if out.shape[0] != batch else out


def init_params(key):
    """Deterministic synthetic parameters (kaiming-uniform-ish like nn.Linear).
    Weights stored (in_features, out_features): y = x @ W + b, identical to
    PyTorch's x @ W.T + b."""
    ks = jax.random.split(key, 6)

    def linear(kw, kb, fan_in, fan_out):
        bound = 1.0 / (fan_in ** 0.5)
        w = jax.random.uniform(kw, (fan_in, fan_out), jnp.float32, -bound, bound)
        # biases kept 2D (1, fan_out) for clean TPU layout / broadcasting
        b = jax.random.uniform(kb, (1, fan_out), jnp.float32, -bound, bound)
        return w, b

    w1, b1 = linear(ks[0], ks[1], 44, 64)
    w2, b2 = linear(ks[2], ks[3], 64, 32)
    w3, b3 = linear(ks[4], ks[5], 32, 2)
    return (w1, b1, w2, b2, w3, b3)


def reference_forward(x, params):
    """Pure-JAX f32 (HIGHEST precision) reference for correctness checks."""
    w1, b1, w2, b2, w3, b3 = params
    hp = jax.lax.Precision.HIGHEST
    h = jnp.maximum(jnp.dot(x, w1, precision=hp) + b1, 0.0)
    h = jnp.maximum(jnp.dot(h, w2, precision=hp) + b2, 0.0)
    return jax.nn.sigmoid(jnp.dot(h, w3, precision=hp) + b3)


if __name__ == "__main__":
    key = jax.random.PRNGKey(0)
    k_params, k_x, k_x2 = jax.random.split(key, 3)
    params = init_params(k_params)

    # Small batch, single grid step, f32 operands (MXU default precision).
    x = jax.random.normal(k_x, (8, 44), jnp.float32)
    ref = reference_forward(x, params)
    out_f32 = jax.block_until_ready(
        meta_classifier_forward(x, params, use_bf16=False))
    assert out_f32.shape == (8, 2), out_f32.shape
    assert jnp.allclose(out_f32, ref, atol=5e-3, rtol=5e-3), (
        f"f32 path max abs diff {jnp.max(jnp.abs(out_f32 - ref))}")

    # bf16 MXU operands, f32 accumulation — looser tolerance vs f32 reference.
    out_bf16 = jax.block_until_ready(
        meta_classifier_forward(x, params, use_bf16=True))
    assert out_bf16.shape == (8, 2), out_bf16.shape
    assert jnp.allclose(out_bf16, ref, atol=3e-2, rtol=3e-2), (
        f"bf16 path max abs diff {jnp.max(jnp.abs(out_bf16 - ref))}")

    # Multi-step grid with an unpadded partial trailing block (600 = 512 + 88).
    x2 = jax.random.normal(k_x2, (600, 44), jnp.float32)
    ref2 = reference_forward(x2, params)
    out2 = jax.block_until_ready(
        meta_classifier_forward(x2, params, block_b=512, use_bf16=False))
    assert out2.shape == (600, 2), out2.shape
    assert jnp.allclose(out2, ref2, atol=5e-3, rtol=5e-3), (
        f"tiled path max abs diff {jnp.max(jnp.abs(out2 - ref2))}")

    print("KERNEL_OK")
</pallas_src>

<mosaic_0001>
module attributes {stable_mosaic.version = 11 : i64} {
  func.func @kernel(%arg0: i32, %arg1: memref<512x44xf32, #tpu.memory_space<vmem>>, %arg2: memref<44x64xf32, #tpu.memory_space<vmem>>, %arg3: memref<1x64xf32, #tpu.memory_space<vmem>>, %arg4: memref<64x32xf32, #tpu.memory_space<vmem>>, %arg5: memref<1x32xf32, #tpu.memory_space<vmem>>, %arg6: memref<32x2xf32, #tpu.memory_space<vmem>>, %arg7: memref<1x2xf32, #tpu.memory_space<vmem>>, %arg8: memref<8x128xf32, #tpu.memory_space<vmem>>) attributes {dimension_semantics = [#tpu.dimension_semantics<parallel>], iteration_bounds = array<i64: 1>, scalar_prefetch = 0 : i64, scratch_operands = 0 : i64, tpu.core_type = #tpu.core_type<tc>, window_params = [{transform_indices = @transform_0, window_bounds = array<i64: 512, 44>}, {pipeline_mode = #tpu.pipeline_mode<synchronous>, transform_indices = @transform_1, window_bounds = array<i64: 44, 64>}, {pipeline_mode = #tpu.pipeline_mode<synchronous>, transform_indices = @transform_2, window_bounds = array<i64: 1, 64>}, {pipeline_mode = #tpu.pipeline_mode<synchronous>, transform_indices = @transform_3, window_bounds = array<i64: 64, 32>}, {pipeline_mode = #tpu.pipeline_mode<synchronous>, transform_indices = @transform_4, window_bounds = array<i64: 1, 32>}, {pipeline_mode = #tpu.pipeline_mode<synchronous>, transform_indices = @transform_5, window_bounds = array<i64: 32, 2>}, {pipeline_mode = #tpu.pipeline_mode<synchronous>, transform_indices = @transform_6, window_bounds = array<i64: 1, 2>}, {transform_indices = @transform_7, window_bounds = array<i64: 8, 128>}]} {
    %c0 = arith.constant 0 : index
    %c0_0 = arith.constant 0 : index
    %0 = vector.load %arg1[%c0, %c0_0] : memref<512x44xf32, #tpu.memory_space<vmem>>, vector<512x44xf32>
    %c0_1 = arith.constant 0 : index
    %c0_2 = arith.constant 0 : index
    %1 = vector.load %arg2[%c0_1, %c0_2] : memref<44x64xf32, #tpu.memory_space<vmem>>, vector<44x64xf32>
    %cst = arith.constant dense<0.000000e+00> : vector<512x64xf32>
    %2 = tpu.matmul %0, %1, %cst {dimension_numbers = #tpu.dot_dimension_numbers<[1], [0], [0], [1], [0, 0, 1, 1], [], []>} : vector<512x44xf32>, vector<44x64xf32>, vector<512x64xf32> -> vector<512x64xf32>
    %c0_3 = arith.constant 0 : index
    %c0_4 = arith.constant 0 : index
    %3 = vector.load %arg3[%c0_3, %c0_4] : memref<1x64xf32, #tpu.memory_space<vmem>>, vector<1x64xf32>
    %4 = vector.broadcast %3 : vector<1x64xf32> to vector<512x64xf32>
    %5 = arith.addf %2, %4 : vector<512x64xf32>
    %cst_5 = arith.constant 0.000000e+00 : f32
    %6 = vector.broadcast %cst_5 : f32 to vector<512x64xf32>
    %7 = arith.maximumf %5, %6 : vector<512x64xf32>
    %c0_6 = arith.constant 0 : index
    %c0_7 = arith.constant 0 : index
    %8 = vector.load %arg4[%c0_6, %c0_7] : memref<64x32xf32, #tpu.memory_space<vmem>>, vector<64x32xf32>
    %cst_8 = arith.constant dense<0.000000e+00> : vector<512x32xf32>
    %9 = tpu.matmul %7, %8, %cst_8 {dimension_numbers = #tpu.dot_dimension_numbers<[1], [0], [0], [1], [0, 0, 1, 1], [], []>} : vector<512x64xf32>, vector<64x32xf32>, vector<512x32xf32> -> vector<512x32xf32>
    %c0_9 = arith.constant 0 : index
    %c0_10 = arith.constant 0 : index
    %10 = vector.load %arg5[%c0_9, %c0_10] : memref<1x32xf32, #tpu.memory_space<vmem>>, vector<1x32xf32>
    %11 = vector.broadcast %10 : vector<1x32xf32> to vector<512x32xf32>
    %12 = arith.addf %9, %11 : vector<512x32xf32>
    %cst_11 = arith.constant 0.000000e+00 : f32
    %13 = vector.broadcast %cst_11 : f32 to vector<512x32xf32>
    %14 = arith.maximumf %12, %13 : vector<512x32xf32>
    %c0_12 = arith.constant 0 : index
    %c0_13 = arith.constant 0 : index
    %15 = vector.load %arg6[%c0_12, %c0_13] : memref<32x2xf32, #tpu.memory_space<vmem>>, vector<32x2xf32>
    %cst_14 = arith.constant dense<0.000000e+00> : vector<512x2xf32>
    %16 = tpu.matmul %14, %15, %cst_14 {dimension_numbers = #tpu.dot_dimension_numbers<[1], [0], [0], [1], [0, 0, 1, 1], [], []>} : vector<512x32xf32>, vector<32x2xf32>, vector<512x2xf32> -> vector<512x2xf32>
    %c0_15 = arith.constant 0 : index
    %c0_16 = arith.constant 0 : index
    %17 = vector.load %arg7[%c0_15, %c0_16] : memref<1x2xf32, #tpu.memory_space<vmem>>, vector<1x2xf32>
    %18 = vector.broadcast %17 : vector<1x2xf32> to vector<512x2xf32>
    %19 = arith.addf %16, %18 : vector<512x2xf32>
    %20 = arith.negf %19 : vector<512x2xf32>
    %21 = math.exp %20 : vector<512x2xf32>
    %cst_17 = arith.constant 1.000000e+00 : f32
    %22 = vector.broadcast %cst_17 : f32 to vector<512x2xf32>
    %23 = arith.addf %22, %21 : vector<512x2xf32>
    %24 = arith.divf %22, %23 : vector<512x2xf32>
    %25 = vector.shape_cast %24 : vector<512x2xf32> to vector<8x128xf32>
    %c0_18 = arith.constant 0 : index
    %c0_19 = arith.constant 0 : index
    %26 = vector.load %arg8[%c0_18, %c0_19] : memref<8x128xf32, #tpu.memory_space<vmem>>, vector<8x128xf32>
    tpu.vector_store %arg8[%c0_18, %c0_19], %25 {strides = array<i32>} : memref<8x128xf32, #tpu.memory_space<vmem>>, vector<8x128xf32>,
    return
  }
  func.func @transform_0(%arg0: i32) -> (i32, i32) {
    %c0_i32 = arith.constant 0 : i32
    %c0_i32_0 = arith.constant 0 : i32
    return %arg0, %c0_i32 : i32, i32
  }
  func.func @transform_1(%arg0: i32) -> (i32, i32) {
    %c0_i32 = arith.constant 0 : i32
    %c0_i32_0 = arith.constant 0 : i32
    %c0_i32_1 = arith.constant 0 : i32
    return %c0_i32, %c0_i32_0 : i32, i32
  }
  func.func @transform_2(%arg0: i32) -> (i32, i32) {
    %c0_i32 = arith.constant 0 : i32
    %c0_i32_0 = arith.constant 0 : i32
    %c0_i32_1 = arith.constant 0 : i32
    return %c0_i32, %c0_i32_0 : i32, i32
  }
  func.func @transform_3(%arg0: i32) -> (i32, i32) {
    %c0_i32 = arith.constant 0 : i32
    %c0_i32_0 = arith.constant 0 : i32
    %c0_i32_1 = arith.constant 0 : i32
    return %c0_i32, %c0_i32_0 : i32, i32
  }
  func.func @transform_4(%arg0: i32) -> (i32, i32) {
    %c0_i32 = arith.constant 0 : i32
    %c0_i32_0 = arith.constant 0 : i32
    %c0_i32_1 = arith.constant 0 : i32
    return %c0_i32, %c0_i32_0 : i32, i32
  }
  func.func @transform_5(%arg0: i32) -> (i32, i32) {
    %c0_i32 = arith.constant 0 : i32
    %c0_i32_0 = arith.constant 0 : i32
    %c0_i32_1 = arith.constant 0 : i32
    return %c0_i32, %c0_i32_0 : i32, i32
  }
  func.func @transform_6(%arg0: i32) -> (i32, i32) {
    %c0_i32 = arith.constant 0 : i32
    %c0_i32_0 = arith.constant 0 : i32
    %c0_i32_1 = arith.constant 0 : i32
    return %c0_i32, %c0_i32_0 : i32, i32
  }
  func.func @transform_7(%arg0: i32) -> (i32, i32) {
    %c0_i32 = arith.constant 0 : i32
    %c0_i32_0 = arith.constant 0 : i32
    return %arg0, %c0_i32 : i32, i32
  }
}

module attributes {stable_mosaic.version = 11 : i64} {
  func.func @kernel(%arg0: i32, %arg1: memref<512x44xf32, #tpu.memory_space<vmem>>, %arg2: memref<44x64xf32, #tpu.memory_space<vmem>>, %arg3: memref<1x64xf32, #tpu.memory_space<vmem>>, %arg4: memref<64x32xf32, #tpu.memory_space<vmem>>, %arg5: memref<1x32xf32, #tpu.memory_space<vmem>>, %arg6: memref<32x2xf32, #tpu.memory_space<vmem>>, %arg7: memref<1x2xf32, #tpu.memory_space<vmem>>, %arg8: memref<512x2xf32, #tpu.memory_space<vmem>>) attributes {dimension_semantics = [#tpu.dimension_semantics<parallel>], iteration_bounds = array<i64: 1>, scalar_prefetch = 0 : i64, scratch_operands = 0 : i64, tpu.core_type = #tpu.core_type<tc>, window_params = [{transform_indices = @transform_0, window_bounds = array<i64: 512, 44>}, {pipeline_mode = #tpu.pipeline_mode<synchronous>, transform_indices = @transform_1, window_bounds = array<i64: 44, 64>}, {pipeline_mode = #tpu.pipeline_mode<synchronous>, transform_indices = @transform_2, window_bounds = array<i64: 1, 64>}, {pipeline_mode = #tpu.pipeline_mode<synchronous>, transform_indices = @transform_3, window_bounds = array<i64: 64, 32>}, {pipeline_mode = #tpu.pipeline_mode<synchronous>, transform_indices = @transform_4, window_bounds = array<i64: 1, 32>}, {pipeline_mode = #tpu.pipeline_mode<synchronous>, transform_indices = @transform_5, window_bounds = array<i64: 32, 2>}, {pipeline_mode = #tpu.pipeline_mode<synchronous>, transform_indices = @transform_6, window_bounds = array<i64: 1, 2>}, {transform_indices = @transform_7, window_bounds = array<i64: 512, 2>}]} {
    %c0 = arith.constant 0 : index
    %c0_0 = arith.constant 0 : index
    %0 = vector.load %arg1[%c0, %c0_0] : memref<512x44xf32, #tpu.memory_space<vmem>>, vector<512x44xf32>
    %c0_1 = arith.constant 0 : index
    %c0_2 = arith.constant 0 : index
    %1 = vector.load %arg2[%c0_1, %c0_2] : memref<44x64xf32, #tpu.memory_space<vmem>>, vector<44x64xf32>
    %cst = arith.constant dense<0.000000e+00> : vector<512x64xf32>
    %2 = tpu.matmul %0, %1, %cst {dimension_numbers = #tpu.dot_dimension_numbers<[1], [0], [0], [1], [0, 0, 1, 1], [], []>} : vector<512x44xf32>, vector<44x64xf32>, vector<512x64xf32> -> vector<512x64xf32>
    %c0_3 = arith.constant 0 : index
    %c0_4 = arith.constant 0 : index
    %3 = vector.load %arg3[%c0_3, %c0_4] : memref<1x64xf32, #tpu.memory_space<vmem>>, vector<1x64xf32>
    %4 = vector.broadcast %3 : vector<1x64xf32> to vector<512x64xf32>
    %5 = arith.addf %2, %4 : vector<512x64xf32>
    %cst_5 = arith.constant 0.000000e+00 : f32
    %6 = vector.broadcast %cst_5 : f32 to vector<512x64xf32>
    %7 = arith.maximumf %5, %6 : vector<512x64xf32>
    %c0_6 = arith.constant 0 : index
    %c0_7 = arith.constant 0 : index
    %8 = vector.load %arg4[%c0_6, %c0_7] : memref<64x32xf32, #tpu.memory_space<vmem>>, vector<64x32xf32>
    %cst_8 = arith.constant dense<0.000000e+00> : vector<512x32xf32>
    %9 = tpu.matmul %7, %8, %cst_8 {dimension_numbers = #tpu.dot_dimension_numbers<[1], [0], [0], [1], [0, 0, 1, 1], [], []>} : vector<512x64xf32>, vector<64x32xf32>, vector<512x32xf32> -> vector<512x32xf32>
    %c0_9 = arith.constant 0 : index
    %c0_10 = arith.constant 0 : index
    %10 = vector.load %arg5[%c0_9, %c0_10] : memref<1x32xf32, #tpu.memory_space<vmem>>, vector<1x32xf32>
    %11 = vector.broadcast %10 : vector<1x32xf32> to vector<512x32xf32>
    %12 = arith.addf %9, %11 : vector<512x32xf32>
    %cst_11 = arith.constant 0.000000e+00 : f32
    %13 = vector.broadcast %cst_11 : f32 to vector<512x32xf32>
    %14 = arith.maximumf %12, %13 : vector<512x32xf32>
    %c0_12 = arith.constant 0 : index
    %c0_13 = arith.constant 0 : index
    %15 = vector.load %arg6[%c0_12, %c0_13] : memref<32x2xf32, #tpu.memory_space<vmem>>, vector<32x2xf32>
    %cst_14 = arith.constant dense<0.000000e+00> : vector<512x2xf32>
    %16 = tpu.matmul %14, %15, %cst_14 {dimension_numbers = #tpu.dot_dimension_numbers<[1], [0], [0], [1], [0, 0, 1, 1], [], []>} : vector<512x32xf32>, vector<32x2xf32>, vector<512x2xf32> -> vector<512x2xf32>
    %c0_15 = arith.constant 0 : index
    %c0_16 = arith.constant 0 : index
    %17 = vector.load %arg7[%c0_15, %c0_16] : memref<1x2xf32, #tpu.memory_space<vmem>>, vector<1x2xf32>
    %18 = vector.broadcast %17 : vector<1x2xf32> to vector<512x2xf32>
    %19 = arith.addf %16, %18 : vector<512x2xf32>
    %20 = arith.negf %19 : vector<512x2xf32>
    %21 = math.exp %20 : vector<512x2xf32>
    %cst_17 = arith.constant 1.000000e+00 : f32
    %22 = vector.broadcast %cst_17 : f32 to vector<512x2xf32>
    %23 = arith.addf %22, %21 : vector<512x2xf32>
    %24 = arith.divf %22, %23 : vector<512x2xf32>
    %c0_18 = arith.constant 0 : index
    %c0_19 = arith.constant 0 : index
    %25 = vector.load %arg8[%c0_18, %c0_19] : memref<512x2xf32, #tpu.memory_space<vmem>>, vector<512x2xf32>
    tpu.vector_store %arg8[%c0_18, %c0_19], %24 {strides = array<i32>} : memref<512x2xf32, #tpu.memory_space<vmem>>, vector<512x2xf32>,
    return
  }
  func.func @transform_0(%arg0: i32) -> (i32, i32) {
    %c0_i32 = arith.constant 0 : i32
    %c0_i32_0 = arith.constant 0 : i32
    return %arg0, %c0_i32 : i32, i32
  }
  func.func @transform_1(%arg0: i32) -> (i32, i32) {
    %c0_i32 = arith.constant 0 : i32
    %c0_i32_0 = arith.constant 0 : i32
    %c0_i32_1 = arith.constant 0 : i32
    return %c0_i32, %c0_i32_0 : i32, i32
  }
  func.func @transform_2(%arg0: i32) -> (i32, i32) {
    %c0_i32 = arith.constant 0 : i32
    %c0_i32_0 = arith.constant 0 : i32
    %c0_i32_1 = arith.constant 0 : i32
    return %c0_i32, %c0_i32_0 : i32, i32
  }
  func.func @transform_3(%arg0: i32) -> (i32, i32) {
    %c0_i32 = arith.constant 0 : i32
    %c0_i32_0 = arith.constant 0 : i32
    %c0_i32_1 = arith.constant 0 : i32
    return %c0_i32, %c0_i32_0 : i32, i32
  }
  func.func @transform_4(%arg0: i32) -> (i32, i32) {
    %c0_i32 = arith.constant 0 : i32
    %c0_i32_0 = arith.constant 0 : i32
    %c0_i32_1 = arith.constant 0 : i32
    return %c0_i32, %c0_i32_0 : i32, i32
  }
  func.func @transform_5(%arg0: i32) -> (i32, i32) {
    %c0_i32 = arith.constant 0 : i32
    %c0_i32_0 = arith.constant 0 : i32
    %c0_i32_1 = arith.constant 0 : i32
    return %c0_i32, %c0_i32_0 : i32, i32
  }
  func.func @transform_6(%arg0: i32) -> (i32, i32) {
    %c0_i32 = arith.constant 0 : i32
    %c0_i32_0 = arith.constant 0 : i32
    %c0_i32_1 = arith.constant 0 : i32
    return %c0_i32, %c0_i32_0 : i32, i32
  }
  func.func @transform_7(%arg0: i32) -> (i32, i32) {
    %c0_i32 = arith.constant 0 : i32
    %c0_i32_0 = arith.constant 0 : i32
    return %arg0, %c0_i32 : i32, i32
  }
}

</mosaic_0001>

<llo_original>
// kernel: tpu_custom_call.1
$region0: #{tpu_custom_call.1}
  #allocation0 [shape = 'u32[]', space=smem, size = 0x4, offset = 0x4, fixed_abs, tag = 'smem constant byte address 0x4 - core index']
  #allocation1 [shape = 'u32[72,128]{1,0:T(1,128)}', space=vmem, size = 0x9000, scoped, tag = 'internal scratch']
  %s0 = inlined_call_operand.vmem [shape: f32[512,44], index: 0, kind: input, shape index: {}]
  %s1 = inlined_call_operand.vmem [shape: f32[44,64], index: 1, kind: input, shape index: {}]
  %s2 = inlined_call_operand.vmem [shape: f32[1,64], index: 2, kind: input, shape index: {}]
  %s3 = inlined_call_operand.vmem [shape: f32[64,32], index: 3, kind: input, shape index: {}]
  %s4 = inlined_call_operand.vmem [shape: f32[1,32], index: 4, kind: input, shape index: {}]
  %s5 = inlined_call_operand.vmem [shape: f32[32,2], index: 5, kind: input, shape index: {}]
  %s6 = inlined_call_operand.vmem [shape: f32[1,2], index: 6, kind: input, shape index: {}]
  %s7 = inlined_call_operand.vmem [shape: f32[512,2], index: 7, kind: output, shape index: {}]
  %s8 = sld [smem:[#allocation0]]
  $region38: #{tpu_custom_call.1} parent=0
    _
  %s10 = ssub.s32 1, %s8
  %s11 = scalar_select 0, %s10, %s8
  // Predicated region
  $region2: #{tpu_custom_call.1} parent=0 // pred_check
    _
  $region3: #{tpu_custom_call.1} parent=0 // pred_check_branch
    %13 = sbr.rel (0) target = $region5
  $region4: #{tpu_custom_call.1} parent=0 // pred_region
    _
  $region5: #{tpu_custom_call.1} parent=0 // pred_fallthru
    _
  // Predicated region
  $region6: #{tpu_custom_call.1} parent=0 // pred_check
    _
  $region7: #{tpu_custom_call.1} parent=0 // pred_check_branch
    %15 = sbr.rel (0) target = $region9
  $region8: #{tpu_custom_call.1} parent=0 // pred_region
    _
  $region9: #{tpu_custom_call.1} parent=0 // pred_fallthru
    _
  // Predicated region
  $region10: #{tpu_custom_call.1} parent=0 // pred_check
    _
  $region11: #{tpu_custom_call.1} parent=0 // pred_check_branch
    %17 = sbr.rel (0) target = $region13
  $region12: #{tpu_custom_call.1} parent=0 // pred_region
    _
  $region13: #{tpu_custom_call.1} parent=0 // pred_fallthru
    _
  // Predicated region
  $region14: #{tpu_custom_call.1} parent=0 // pred_check
    _
  $region15: #{tpu_custom_call.1} parent=0 // pred_check_branch
    %19 = sbr.rel (0) target = $region17
  $region16: #{tpu_custom_call.1} parent=0 // pred_region
    _
  $region17: #{tpu_custom_call.1} parent=0 // pred_fallthru
    _
  // Predicated region
  $region18: #{tpu_custom_call.1} parent=0 // pred_check
    _
  $region19: #{tpu_custom_call.1} parent=0 // pred_check_branch
    %21 = sbr.rel (0) target = $region21
  $region20: #{tpu_custom_call.1} parent=0 // pred_region
    _
  $region21: #{tpu_custom_call.1} parent=0 // pred_fallthru
    _
  // Predicated region
  $region22: #{tpu_custom_call.1} parent=0 // pred_check
    _
  $region23: #{tpu_custom_call.1} parent=0 // pred_check_branch
    %23 = sbr.rel (0) target = $region25
  $region24: #{tpu_custom_call.1} parent=0 // pred_region
    _
  $region25: #{tpu_custom_call.1} parent=0 // pred_fallthru
    _
  // Predicated region
  $region26: #{tpu_custom_call.1} parent=0 // pred_check
    _
  $region27: #{tpu_custom_call.1} parent=0 // pred_check_branch
    %25 = sbr.rel (0) target = $region29
  $region28: #{tpu_custom_call.1} parent=0 // pred_region
    _
  $region29: #{tpu_custom_call.1} parent=0 // pred_fallthru
    _
  %v26 = vld [vmem:[%s0] sm:$0xff]
  %v27 = vld [vmem:[%s0 + $0x8] sm:$0xff]
  %v28 = vld [vmem:[%s0 + $0x10] sm:$0xff]
  %v29 = vld [vmem:[%s0 + $0x18] sm:$0xff]
  %v30 = vld [vmem:[%s0 + $0x20] sm:$0xff]
  %v31 = vld [vmem:[%s0 + $0x28] sm:$0xff]
  %v32 = vld [vmem:[%s0 + $0x30] sm:$0xff]
  %v33 = vld [vmem:[%s0 + $0x38] sm:$0xff]
  %v34 = vld [vmem:[%s0 + $0x40] sm:$0xff]
  %v35 = vld [vmem:[%s0 + $0x48] sm:$0xff]
  %v36 = vld [vmem:[%s0 + $0x50] sm:$0xff]
  %v37 = vld [vmem:[%s0 + $0x58] sm:$0xff]
  %v38 = vld [vmem:[%s0 + $0x60] sm:$0xff]
  %v39 = vld [vmem:[%s0 + $0x68] sm:$0xff]
  %v40 = vld [vmem:[%s0 + $0x70] sm:$0xff]
  %v41 = vld [vmem:[%s0 + $0x78] sm:$0xff]
  %v42 = vld [vmem:[%s0 + $0x80] sm:$0xff]
  %v43 = vld [vmem:[%s0 + $0x88] sm:$0xff]
  %v44 = vld [vmem:[%s0 + $0x90] sm:$0xff]
  %v45 = vld [vmem:[%s0 + $0x98] sm:$0xff]
  %v46 = vld [vmem:[%s0 + $0xa0] sm:$0xff]
  %v47 = vld [vmem:[%s0 + $0xa8] sm:$0xff]
  %v48 = vld [vmem:[%s0 + $0xb0] sm:$0xff]
  %v49 = vld [vmem:[%s0 + $0xb8] sm:$0xff]
  %v50 = vld [vmem:[%s0 + $0xc0] sm:$0xff]
  %v51 = vld [vmem:[%s0 + $0xc8] sm:$0xff]
  %v52 = vld [vmem:[%s0 + $0xd0] sm:$0xff]
  %v53 = vld [vmem:[%s0 + $0xd8] sm:$0xff]
  %v54 = vld [vmem:[%s0 + $0xe0] sm:$0xff]
  %v55 = vld [vmem:[%s0 + $0xe8] sm:$0xff]
  %v56 = vld [vmem:[%s0 + $0xf0] sm:$0xff]
  %v57 = vld [vmem:[%s0 + $0xf8] sm:$0xff]
  %v58 = vld [vmem:[%s0 + $0x100] sm:$0xff]
  %v59 = vld [vmem:[%s0 + $0x108] sm:$0xff]
  %v60 = vld [vmem:[%s0 + $0x110] sm:$0xff]
  %v61 = vld [vmem:[%s0 + $0x118] sm:$0xff]
  %v62 = vld [vmem:[%s0 + $0x120] sm:$0xff]
  %v63 = vld [vmem:[%s0 + $0x128] sm:$0xff]
  %v64 = vld [vmem:[%s0 + $0x130] sm:$0xff]
  %v65 = vld [vmem:[%s0 + $0x138] sm:$0xff]
  %v66 = vld [vmem:[%s0 + $0x140] sm:$0xff]
  %v67 = vld [vmem:[%s0 + $0x148] sm:$0xff]
  %v68 = vld [vmem:[%s0 + $0x150] sm:$0xff]
  %v69 = vld [vmem:[%s0 + $0x158] sm:$0xff]
  %v70 = vld [vmem:[%s0 + $0x160] sm:$0xff]
  %v71 = vld [vmem:[%s0 + $0x168] sm:$0xff]
  %v72 = vld [vmem:[%s0 + $0x170] sm:$0xff]
  %v73 = vld [vmem:[%s0 + $0x178] sm:$0xff]
  %v74 = vld [vmem:[%s0 + $0x180] sm:$0xff]
  %v75 = vld [vmem:[%s0 + $0x188] sm:$0xff]
  %v76 = vld [vmem:[%s0 + $0x190] sm:$0xff]
  %v77 = vld [vmem:[%s0 + $0x198] sm:$0xff]
  %v78 = vld [vmem:[%s0 + $0x1a0] sm:$0xff]
  %v79 = vld [vmem:[%s0 + $0x1a8] sm:$0xff]
  %v80 = vld [vmem:[%s0 + $0x1b0] sm:$0xff]
  %v81 = vld [vmem:[%s0 + $0x1b8] sm:$0xff]
  %v82 = vld [vmem:[%s0 + $0x1c0] sm:$0xff]
  %v83 = vld [vmem:[%s0 + $0x1c8] sm:$0xff]
  %v84 = vld [vmem:[%s0 + $0x1d0] sm:$0xff]
  %v85 = vld [vmem:[%s0 + $0x1d8] sm:$0xff]
  %v86 = vld [vmem:[%s0 + $0x1e0] sm:$0xff]
  %v87 = vld [vmem:[%s0 + $0x1e8] sm:$0xff]
  %v88 = vld [vmem:[%s0 + $0x1f0] sm:$0xff]
  %v89 = vld [vmem:[%s0 + $0x1f8] sm:$0xff]
  %v90 = vld [vmem:[%s1] sm:$0xff]
  %v91 = vld [vmem:[%s1 + $0x8] sm:$0xff]
  %v92 = vld [vmem:[%s1 + $0x10] sm:$0xff]
  %v93 = vld [vmem:[%s1 + $0x18] sm:$0xff]
  %v94 = vld [vmem:[%s1 + $0x20] sm:$0xff]
  %v95 = vld [vmem:[%s1 + $0x28] sm:$0xf]
  %v96 = vld [vmem:[%s2] sm:$0x1]
  %v98 = vperm.slane %v96, 0
  %vm100 = vcmask 359424
  %v102 = vsel %vm100, %v26, 0
  %v105 = vsel %vm100, %v27, 0
  %v108 = vsel %vm100, %v28, 0
  %v111 = vsel %vm100, %v29, 0
  %v114 = vsel %vm100, %v30, 0
  %v117 = vsel %vm100, %v31, 0
  %v120 = vsel %vm100, %v32, 0
  %v123 = vsel %vm100, %v33, 0
  %v126 = vsel %vm100, %v34, 0
  %v129 = vsel %vm100, %v35, 0
  %v132 = vsel %vm100, %v36, 0
  %v135 = vsel %vm100, %v37, 0
  %v138 = vsel %vm100, %v38, 0
  %v141 = vsel %vm100, %v39, 0
  %v144 = vsel %vm100, %v40, 0
  %v147 = vsel %vm100, %v41, 0
  %v150 = vsel %vm100, %v42, 0
  %v153 = vsel %vm100, %v43, 0
  %v156 = vsel %vm100, %v44, 0
  %v159 = vsel %vm100, %v45, 0
  %v162 = vsel %vm100, %v46, 0
  %v165 = vsel %vm100, %v47, 0
  %v168 = vsel %vm100, %v48, 0
  %v171 = vsel %vm100, %v49, 0
  %v174 = vsel %vm100, %v50, 0
  %v177 = vsel %vm100, %v51, 0
  %v180 = vsel %vm100, %v52, 0
  %v183 = vsel %vm100, %v53, 0
  %v186 = vsel %vm100, %v54, 0
  %v189 = vsel %vm100, %v55, 0
  %v192 = vsel %vm100, %v56, 0
  %v195 = vsel %vm100, %v57, 0
  %v198 = vsel %vm100, %v58, 0
  %v201 = vsel %vm100, %v59, 0
  %v204 = vsel %vm100, %v60, 0
  %v207 = vsel %vm100, %v61, 0
  %v210 = vsel %vm100, %v62, 0
  %v213 = vsel %vm100, %v63, 0
  %v216 = vsel %vm100, %v64, 0
  %v219 = vsel %vm100, %v65, 0
  %v222 = vsel %vm100, %v66, 0
  %v225 = vsel %vm100, %v67, 0
  %v228 = vsel %vm100, %v68, 0
  %v231 = vsel %vm100, %v69, 0
  %v234 = vsel %vm100, %v70, 0
  %v237 = vsel %vm100, %v71, 0
  %v240 = vsel %vm100, %v72, 0
  %v243 = vsel %vm100, %v73, 0
  %v246 = vsel %vm100, %v74, 0
  %v249 = vsel %vm100, %v75, 0
  %v252 = vsel %vm100, %v76, 0
  %v255 = vsel %vm100, %v77, 0
  %v258 = vsel %vm100, %v78, 0
  %v261 = vsel %vm100, %v79, 0
  %v264 = vsel %vm100, %v80, 0
  %v267 = vsel %vm100, %v81, 0
  %v270 = vsel %vm100, %v82, 0
  %v273 = vsel %vm100, %v83, 0
  %v276 = vsel %vm100, %v84, 0
  %v279 = vsel %vm100, %v85, 0
  %v282 = vsel %vm100, %v86, 0
  %v285 = vsel %vm100, %v87, 0
  %v288 = vsel %vm100, %v88, 0
  %v291 = vsel %vm100, %v89, 0
  %vm293 = vcmask 1043456
  %v295 = vsel %vm293, %v95, 0
  %297 = vmatpush.msra.mxu0 0.0
  %298 = vmatpush.msra.mxu0 0.0
  %299 = vmatpush.msra.mxu0 0.0
  %300 = vmatpush.msra.mxu0 0.0
  %301 = vmatpush.msra.mxu0 0.0
  %302 = vmatpush.msra.mxu0 0.0
  %303 = vmatpush.msra.mxu0 0.0
  %304 = vmatpush.msra.mxu0 0.0
  %305 = vmatpush.msra.mxu0 0.0
  %306 = vmatpush.msra.mxu0 0.0
  %307 = vmatpush.msra.mxu0 %v295
  %308 = vmatpush.msra.mxu0 %v94
  %309 = vmatpush.msra.mxu0 %v93
  %310 = vmatpush.msra.mxu0 %v92
  %311 = vmatpush.msra.mxu0 %v91
  %312 = vmatpush.msra.mxu0 %v90
  %313 = vmatmul.f32.gmra.mxu0 %v102
  %v314 = vpop.f32.mrf.mxu0
  %v315 = vadd.f32 %v98, %v314
  %316 = vmatmul.f32.gmra.mxu0 %v105
  %v317 = vpop.f32.mrf.mxu0
  %v318 = vadd.f32 %v98, %v317
  %319 = vmatmul.f32.gmra.mxu0 %v108
  %v320 = vpop.f32.mrf.mxu0
  %v321 = vadd.f32 %v98, %v320
  %322 = vmatmul.f32.gmra.mxu0 %v111
  %v323 = vpop.f32.mrf.mxu0
  %v324 = vadd.f32 %v98, %v323
  %325 = vmatmul.f32.gmra.mxu0 %v114
  %v326 = vpop.f32.mrf.mxu0
  %v327 = vadd.f32 %v98, %v326
  %328 = vmatmul.f32.gmra.mxu0 %v117
  %v329 = vpop.f32.mrf.mxu0
  %v330 = vadd.f32 %v98, %v329
  %331 = vmatmul.f32.gmra.mxu0 %v120
  %v332 = vpop.f32.mrf.mxu0
  %v333 = vadd.f32 %v98, %v332
  %334 = vmatmul.f32.gmra.mxu0 %v123
  %v335 = vpop.f32.mrf.mxu0
  %v336 = vadd.f32 %v98, %v335
  %337 = vmatmul.f32.gmra.mxu0 %v126
  %v338 = vpop.f32.mrf.mxu0
  %v339 = vadd.f32 %v98, %v338
  %340 = vmatmul.f32.gmra.mxu0 %v129
  %v341 = vpop.f32.mrf.mxu0
  %v342 = vadd.f32 %v98, %v341
  %343 = vmatmul.f32.gmra.mxu0 %v132
  %v344 = vpop.f32.mrf.mxu0
  %v345 = vadd.f32 %v98, %v344
  %346 = vmatmul.f32.gmra.mxu0 %v135
  %v347 = vpop.f32.mrf.mxu0
  %v348 = vadd.f32 %v98, %v347
  %349 = vmatmul.f32.gmra.mxu0 %v138
  %v350 = vpop.f32.mrf.mxu0
  %v351 = vadd.f32 %v98, %v350
  %352 = vmatmul.f32.gmra.mxu0 %v141
  %v353 = vpop.f32.mrf.mxu0
  %v354 = vadd.f32 %v98, %v353
  %355 = vmatmul.f32.gmra.mxu0 %v144
  %v356 = vpop.f32.mrf.mxu0
  %v357 = vadd.f32 %v98, %v356
  %358 = vmatmul.f32.gmra.mxu0 %v147
  %v359 = vpop.f32.mrf.mxu0
  %v360 = vadd.f32 %v98, %v359
  %361 = vmatmul.f32.gmra.mxu0 %v150
  %v362 = vpop.f32.mrf.mxu0
  %v363 = vadd.f32 %v98, %v362
  %364 = vmatmul.f32.gmra.mxu0 %v153
  %v365 = vpop.f32.mrf.mxu0
  %v366 = vadd.f32 %v98, %v365
  %367 = vmatmul.f32.gmra.mxu0 %v156
  %v368 = vpop.f32.mrf.mxu0
  %v369 = vadd.f32 %v98, %v368
  %370 = vmatmul.f32.gmra.mxu0 %v159
  %v371 = vpop.f32.mrf.mxu0
  %v372 = vadd.f32 %v98, %v371
  %373 = vmatmul.f32.gmra.mxu0 %v162
  %v374 = vpop.f32.mrf.mxu0
  %v375 = vadd.f32 %v98, %v374
  %376 = vmatmul.f32.gmra.mxu0 %v165
  %v377 = vpop.f32.mrf.mxu0
  %v378 = vadd.f32 %v98, %v377
  %379 = vmatmul.f32.gmra.mxu0 %v168
  %v380 = vpop.f32.mrf.mxu0
  %v381 = vadd.f32 %v98, %v380
  %382 = vmatmul.f32.gmra.mxu0 %v171
  %v383 = vpop.f32.mrf.mxu0
  %v384 = vadd.f32 %v98, %v383
  %385 = vmatmul.f32.gmra.mxu0 %v174
  %v386 = vpop.f32.mrf.mxu0
  %v387 = vadd.f32 %v98, %v386
  %388 = vmatmul.f32.gmra.mxu0 %v177
  %v389 = vpop.f32.mrf.mxu0
  %v390 = vadd.f32 %v98, %v389
  %391 = vmatmul.f32.gmra.mxu0 %v180
  %v392 = vpop.f32.mrf.mxu0
  %v393 = vadd.f32 %v98, %v392
  %394 = vmatmul.f32.gmra.mxu0 %v183
  %v395 = vpop.f32.mrf.mxu0
  %v396 = vadd.f32 %v98, %v395
  %397 = vmatmul.f32.gmra.mxu0 %v186
  %v398 = vpop.f32.mrf.mxu0
  %v399 = vadd.f32 %v98, %v398
  %400 = vmatmul.f32.gmra.mxu0 %v189
  %v401 = vpop.f32.mrf.mxu0
  %v402 = vadd.f32 %v98, %v401
  %403 = vmatmul.f32.gmra.mxu0 %v192
  %v404 = vpop.f32.mrf.mxu0
  %v405 = vadd.f32 %v98, %v404
  %406 = vmatmul.f32.gmra.mxu0 %v195
  %v407 = vpop.f32.mrf.mxu0
  %v408 = vadd.f32 %v98, %v407
  %409 = vmatmul.f32.gmra.mxu0 %v198
  %v410 = vpop.f32.mrf.mxu0
  %v411 = vadd.f32 %v98, %v410
  %412 = vmatmul.f32.gmra.mxu0 %v201
  %v413 = vpop.f32.mrf.mxu0
  %v414 = vadd.f32 %v98, %v413
  %415 = vmatmul.f32.gmra.mxu0 %v204
  %v416 = vpop.f32.mrf.mxu0
  %v417 = vadd.f32 %v98, %v416
  %418 = vmatmul.f32.gmra.mxu0 %v207
  %v419 = vpop.f32.mrf.mxu0
  %v420 = vadd.f32 %v98, %v419
  %421 = vmatmul.f32.gmra.mxu0 %v210
  %v422 = vpop.f32.mrf.mxu0
  %v423 = vadd.f32 %v98, %v422
  %424 = vmatmul.f32.gmra.mxu0 %v213
  %v425 = vpop.f32.mrf.mxu0
  %v426 = vadd.f32 %v98, %v425
  %427 = vmatmul.f32.gmra.mxu0 %v216
  %v428 = vpop.f32.mrf.mxu0
  %v429 = vadd.f32 %v98, %v428
  %430 = vmatmul.f32.gmra.mxu0 %v219
  %v431 = vpop.f32.mrf.mxu0
  %v432 = vadd.f32 %v98, %v431
  %433 = vmatmul.f32.gmra.mxu0 %v222
  %v434 = vpop.f32.mrf.mxu0
  %v435 = vadd.f32 %v98, %v434
  %436 = vmatmul.f32.gmra.mxu0 %v225
  %v437 = vpop.f32.mrf.mxu0
  %v438 = vadd.f32 %v98, %v437
  %439 = vmatmul.f32.gmra.mxu0 %v228
  %v440 = vpop.f32.mrf.mxu0
  %v441 = vadd.f32 %v98, %v440
  %442 = vmatmul.f32.gmra.mxu0 %v231
  %v443 = vpop.f32.mrf.mxu0
  %v444 = vadd.f32 %v98, %v443
  %445 = vmatmul.f32.gmra.mxu0 %v234
  %v446 = vpop.f32.mrf.mxu0
  %v447 = vadd.f32 %v98, %v446
  %448 = vmatmul.f32.gmra.mxu0 %v237
  %v449 = vpop.f32.mrf.mxu0
  %v450 = vadd.f32 %v98, %v449
  %451 = vmatmul.f32.gmra.mxu0 %v240
  %v452 = vpop.f32.mrf.mxu0
  %v453 = vadd.f32 %v98, %v452
  %454 = vmatmul.f32.gmra.mxu0 %v243
  %v455 = vpop.f32.mrf.mxu0
  %v456 = vadd.f32 %v98, %v455
  %457 = vmatmul.f32.gmra.mxu0 %v246
  %v458 = vpop.f32.mrf.mxu0
  %v459 = vadd.f32 %v98, %v458
  %460 = vmatmul.f32.gmra.mxu0 %v249
  %v461 = vpop.f32.mrf.mxu0
  %v462 = vadd.f32 %v98, %v461
  %463 = vmatmul.f32.gmra.mxu0 %v252
  %v464 = vpop.f32.mrf.mxu0
  %v465 = vadd.f32 %v98, %v464
  %466 = vmatmul.f32.gmra.mxu0 %v255
  %v467 = vpop.f32.mrf.mxu0
  %v468 = vadd.f32 %v98, %v467
  %469 = vmatmul.f32.gmra.mxu0 %v258
  %v470 = vpop.f32.mrf.mxu0
  %v471 = vadd.f32 %v98, %v470
  %472 = vmatmul.f32.gmra.mxu0 %v261
  %v473 = vpop.f32.mrf.mxu0
  %v474 = vadd.f32 %v98, %v473
  %475 = vmatmul.f32.gmra.mxu0 %v264
  %v476 = vpop.f32.mrf.mxu0
  %v477 = vadd.f32 %v98, %v476
  %478 = vmatmul.f32.gmra.mxu0 %v267
  %v479 = vpop.f32.mrf.mxu0
  %v480 = vadd.f32 %v98, %v479
  %481 = vmatmul.f32.gmra.mxu0 %v270
  %v482 = vpop.f32.mrf.mxu0
  %v483 = vadd.f32 %v98, %v482
  %484 = vmatmul.f32.gmra.mxu0 %v273
  %v485 = vpop.f32.mrf.mxu0
  %v486 = vadd.f32 %v98, %v485
  %487 = vmatmul.f32.gmra.mxu0 %v276
  %v488 = vpop.f32.mrf.mxu0
  %v489 = vadd.f32 %v98, %v488
  %490 = vmatmul.f32.gmra.mxu0 %v279
  %v491 = vpop.f32.mrf.mxu0
  %v492 = vadd.f32 %v98, %v491
  %493 = vmatmul.f32.gmra.mxu0 %v282
  %v494 = vpop.f32.mrf.mxu0
  %v495 = vadd.f32 %v98, %v494
  %496 = vmatmul.f32.gmra.mxu0 %v285
  %v497 = vpop.f32.mrf.mxu0
  %v498 = vadd.f32 %v98, %v497
  %499 = vmatmul.f32.gmra.mxu0 %v288
  %v500 = vpop.f32.mrf.mxu0
  %v501 = vadd.f32 %v98, %v500
  %502 = vmatmul.f32.gmra.mxu0 %v291
  %v503 = vpop.f32.mrf.mxu0
  %v504 = vadd.f32 %v98, %v503
  %505 = vdwg.mxu0
  %v506 = vmax.f32 %v315, 0.0
  %v507 = vmax.f32 %v318, 0.0
  %v508 = vmax.f32 %v321, 0.0
  %v509 = vmax.f32 %v324, 0.0
  %v510 = vmax.f32 %v327, 0.0
  %v511 = vmax.f32 %v330, 0.0
  %v512 = vmax.f32 %v333, 0.0
  %v513 = vmax.f32 %v336, 0.0
  %v514 = vmax.f32 %v339, 0.0
  %v515 = vmax.f32 %v342, 0.0
  %v516 = vmax.f32 %v345, 0.0
  %v517 = vmax.f32 %v348, 0.0
  %v518 = vmax.f32 %v351, 0.0
  %v519 = vmax.f32 %v354, 0.0
  %v520 = vmax.f32 %v357, 0.0
  %v521 = vmax.f32 %v360, 0.0
  %v522 = vmax.f32 %v363, 0.0
  %v523 = vmax.f32 %v366, 0.0
  %v524 = vmax.f32 %v369, 0.0
  %v525 = vmax.f32 %v372, 0.0
  %v526 = vmax.f32 %v375, 0.0
  %v527 = vmax.f32 %v378, 0.0
  %v528 = vmax.f32 %v381, 0.0
  %v529 = vmax.f32 %v384, 0.0
  %v530 = vmax.f32 %v387, 0.0
  %v531 = vmax.f32 %v390, 0.0
  %v532 = vmax.f32 %v393, 0.0
  %v533 = vmax.f32 %v396, 0.0
  %v534 = vmax.f32 %v399, 0.0
  %v535 = vmax.f32 %v402, 0.0
  %v536 = vmax.f32 %v405, 0.0
  %v537 = vmax.f32 %v408, 0.0
  %v538 = vmax.f32 %v411, 0.0
  %v539 = vmax.f32 %v414, 0.0
  %v540 = vmax.f32 %v417, 0.0
  %v541 = vmax.f32 %v420, 0.0
  %v542 = vmax.f32 %v423, 0.0
  %v543 = vmax.f32 %v426, 0.0
  %v544 = vmax.f32 %v429, 0.0
  %v545 = vmax.f32 %v432, 0.0
  %v546 = vmax.f32 %v435, 0.0
  %v547 = vmax.f32 %v438, 0.0
  %v548 = vmax.f32 %v441, 0.0
  %v549 = vmax.f32 %v444, 0.0
  %v550 = vmax.f32 %v447, 0.0
  %v551 = vmax.f32 %v450, 0.0
  %v552 = vmax.f32 %v453, 0.0
  %v553 = vmax.f32 %v456, 0.0
  %v554 = vmax.f32 %v459, 0.0
  %v555 = vmax.f32 %v462, 0.0
  %v556 = vmax.f32 %v465, 0.0
  %v557 = vmax.f32 %v468, 0.0
  %v558 = vmax.f32 %v471, 0.0
  %v559 = vmax.f32 %v474, 0.0
  %v560 = vmax.f32 %v477, 0.0
  %v561 = vmax.f32 %v480, 0.0
  %v562 = vmax.f32 %v483, 0.0
  %v563 = vmax.f32 %v486, 0.0
  %v564 = vmax.f32 %v489, 0.0
  %v565 = vmax.f32 %v492, 0.0
  %v566 = vmax.f32 %v495, 0.0
  %v567 = vmax.f32 %v498, 0.0
  %v568 = vmax.f32 %v501, 0.0
  %v569 = vmax.f32 %v504, 0.0
  %v570 = vld [vmem:[%s3] sm:$0xff]
  %v571 = vld [vmem:[%s3 + $0x8] sm:$0xff]
  %v572 = vld [vmem:[%s3 + $0x10] sm:$0xff]
  %v573 = vld [vmem:[%s3 + $0x18] sm:$0xff]
  %v574 = vld [vmem:[%s3 + $0x20] sm:$0xff]
  %v575 = vld [vmem:[%s3 + $0x28] sm:$0xff]
  %v576 = vld [vmem:[%s3 + $0x30] sm:$0xff]
  %v577 = vld [vmem:[%s3 + $0x38] sm:$0xff]
  %v578 = vld [vmem:[%s4] sm:$0x1]
  %v580 = vperm.slane %v578, 0
  %vm582 = vcmask 523264
  %v584 = vsel %vm582, %v506, 0
  %v587 = vsel %vm582, %v507, 0
  %v590 = vsel %vm582, %v508, 0
  %v593 = vsel %vm582, %v509, 0
  %v596 = vsel %vm582, %v510, 0
  %v599 = vsel %vm582, %v511, 0
  %v602 = vsel %vm582, %v512, 0
  %v605 = vsel %vm582, %v513, 0
  %v608 = vsel %vm582, %v514, 0
  %v611 = vsel %vm582, %v515, 0
  %v614 = vsel %vm582, %v516, 0
  %v617 = vsel %vm582, %v517, 0
  %v620 = vsel %vm582, %v518, 0
  %v623 = vsel %vm582, %v519, 0
  %v626 = vsel %vm582, %v520, 0
  %v629 = vsel %vm582, %v521, 0
  %v632 = vsel %vm582, %v522, 0
  %v635 = vsel %vm582, %v523, 0
  %v638 = vsel %vm582, %v524, 0
  %v641 = vsel %vm582, %v525, 0
  %v644 = vsel %vm582, %v526, 0
  %v647 = vsel %vm582, %v527, 0
  %v650 = vsel %vm582, %v528, 0
  %v653 = vsel %vm582, %v529, 0
  %v656 = vsel %vm582, %v530, 0
  %v659 = vsel %vm582, %v531, 0
  %v662 = vsel %vm582, %v532, 0
  %v665 = vsel %vm582, %v533, 0
  %v668 = vsel %vm582, %v534, 0
  %v671 = vsel %vm582, %v535, 0
  %v674 = vsel %vm582, %v536, 0
  %v677 = vsel %vm582, %v537, 0
  %v680 = vsel %vm582, %v538, 0
  %v683 = vsel %vm582, %v539, 0
  %v686 = vsel %vm582, %v540, 0
  %v689 = vsel %vm582, %v541, 0
  %v692 = vsel %vm582, %v542, 0
  %v695 = vsel %vm582, %v543, 0
  %v698 = vsel %vm582, %v544, 0
  %v701 = vsel %vm582, %v545, 0
  %v704 = vsel %vm582, %v546, 0
  %v707 = vsel %vm582, %v547, 0
  %v710 = vsel %vm582, %v548, 0
  %v713 = vsel %vm582, %v549, 0
  %v716 = vsel %vm582, %v550, 0
  %v719 = vsel %vm582, %v551, 0
  %v722 = vsel %vm582, %v552, 0
  %v725 = vsel %vm582, %v553, 0
  %v728 = vsel %vm582, %v554, 0
  %v731 = vsel %vm582, %v555, 0
  %v734 = vsel %vm582, %v556, 0
  %v737 = vsel %vm582, %v557, 0
  %v740 = vsel %vm582, %v558, 0
  %v743 = vsel %vm582, %v559, 0
  %v746 = vsel %vm582, %v560, 0
  %v749 = vsel %vm582, %v561, 0
  %v752 = vsel %vm582, %v562, 0
  %v755 = vsel %vm582, %v563, 0
  %v758 = vsel %vm582, %v564, 0
  %v761 = vsel %vm582, %v565, 0
  %v764 = vsel %vm582, %v566, 0
  %v767 = vsel %vm582, %v567, 0
  %v770 = vsel %vm582, %v568, 0
  %v773 = vsel %vm582, %v569, 0
  %775 = vmatpush.msra.mxu0 0.0
  %776 = vmatpush.msra.mxu0 0.0
  %777 = vmatpush.msra.mxu0 0.0
  %778 = vmatpush.msra.mxu0 0.0
  %779 = vmatpush.msra.mxu0 0.0
  %780 = vmatpush.msra.mxu0 0.0
  %781 = vmatpush.msra.mxu0 0.0
  %782 = vmatpush.msra.mxu0 0.0
  %783 = vmatpush.msra.mxu0 %v577
  %784 = vmatpush.msra.mxu0 %v576
  %785 = vmatpush.msra.mxu0 %v575
  %786 = vmatpush.msra.mxu0 %v574
  %787 = vmatpush.msra.mxu0 %v573
  %788 = vmatpush.msra.mxu0 %v572
  %789 = vmatpush.msra.mxu0 %v571
  %790 = vmatpush.msra.mxu0 %v570
  %791 = vmatmul.f32.gmra.mxu0 %v584
  %v792 = vpop.f32.mrf.mxu0
  %v793 = vadd.f32 %v580, %v792
  %794 = vmatmul.f32.gmra.mxu0 %v587
  %v795 = vpop.f32.mrf.mxu0
  %v796 = vadd.f32 %v580, %v795
  %797 = vmatmul.f32.gmra.mxu0 %v590
  %v798 = vpop.f32.mrf.mxu0
  %v799 = vadd.f32 %v580, %v798
  %800 = vmatmul.f32.gmra.mxu0 %v593
  %v801 = vpop.f32.mrf.mxu0
  %v802 = vadd.f32 %v580, %v801
  %803 = vmatmul.f32.gmra.mxu0 %v596
  %v804 = vpop.f32.mrf.mxu0
  %v805 = vadd.f32 %v580, %v804
  %806 = vmatmul.f32.gmra.mxu0 %v599
  %v807 = vpop.f32.mrf.mxu0
  %v808 = vadd.f32 %v580, %v807
  %809 = vmatmul.f32.gmra.mxu0 %v602
  %v810 = vpop.f32.mrf.mxu0
  %v811 = vadd.f32 %v580, %v810
  %812 = vmatmul.f32.gmra.mxu0 %v605
  %v813 = vpop.f32.mrf.mxu0
  %v814 = vadd.f32 %v580, %v813
  %815 = vmatmul.f32.gmra.mxu0 %v608
  %v816 = vpop.f32.mrf.mxu0
  %v817 = vadd.f32 %v580, %v816
  %818 = vmatmul.f32.gmra.mxu0 %v611
  %v819 = vpop.f32.mrf.mxu0
  %v820 = vadd.f32 %v580, %v819
  %821 = vmatmul.f32.gmra.mxu0 %v614
  %v822 = vpop.f32.mrf.mxu0
  %v823 = vadd.f32 %v580, %v822
  %824 = vmatmul.f32.gmra.mxu0 %v617
  %v825 = vpop.f32.mrf.mxu0
  %v826 = vadd.f32 %v580, %v825
  %827 = vmatmul.f32.gmra.mxu0 %v620
  %v828 = vpop.f32.mrf.mxu0
  %v829 = vadd.f32 %v580, %v828
  %830 = vmatmul.f32.gmra.mxu0 %v623
  %v831 = vpop.f32.mrf.mxu0
  %v832 = vadd.f32 %v580, %v831
  %833 = vmatmul.f32.gmra.mxu0 %v626
  %v834 = vpop.f32.mrf.mxu0
  %v835 = vadd.f32 %v580, %v834
  %836 = vmatmul.f32.gmra.mxu0 %v629
  %v837 = vpop.f32.mrf.mxu0
  %v838 = vadd.f32 %v580, %v837
  %839 = vmatmul.f32.gmra.mxu0 %v632
  %v840 = vpop.f32.mrf.mxu0
  %v841 = vadd.f32 %v580, %v840
  %842 = vmatmul.f32.gmra.mxu0 %v635
  %v843 = vpop.f32.mrf.mxu0
  %v844 = vadd.f32 %v580, %v843
  %845 = vmatmul.f32.gmra.mxu0 %v638
  %v846 = vpop.f32.mrf.mxu0
  %v847 = vadd.f32 %v580, %v846
  %848 = vmatmul.f32.gmra.mxu0 %v641
  %v849 = vpop.f32.mrf.mxu0
  %v850 = vadd.f32 %v580, %v849
  %851 = vmatmul.f32.gmra.mxu0 %v644
  %v852 = vpop.f32.mrf.mxu0
  %v853 = vadd.f32 %v580, %v852
  %854 = vmatmul.f32.gmra.mxu0 %v647
  %v855 = vpop.f32.mrf.mxu0
  %v856 = vadd.f32 %v580, %v855
  %857 = vmatmul.f32.gmra.mxu0 %v650
  %v858 = vpop.f32.mrf.mxu0
  %v859 = vadd.f32 %v580, %v858
  %860 = vmatmul.f32.gmra.mxu0 %v653
  %v861 = vpop.f32.mrf.mxu0
  %v862 = vadd.f32 %v580, %v861
  %863 = vmatmul.f32.gmra.mxu0 %v656
  %v864 = vpop.f32.mrf.mxu0
  %v865 = vadd.f32 %v580, %v864
  %866 = vmatmul.f32.gmra.mxu0 %v659
  %v867 = vpop.f32.mrf.mxu0
  %v868 = vadd.f32 %v580, %v867
  %869 = vmatmul.f32.gmra.mxu0 %v662
  %v870 = vpop.f32.mrf.mxu0
  %v871 = vadd.f32 %v580, %v870
  %872 = vmatmul.f32.gmra.mxu0 %v665
  %v873 = vpop.f32.mrf.mxu0
  %v874 = vadd.f32 %v580, %v873
  %875 = vmatmul.f32.gmra.mxu0 %v668
  %v876 = vpop.f32.mrf.mxu0
  %v877 = vadd.f32 %v580, %v876
  %878 = vmatmul.f32.gmra.mxu0 %v671
  %v879 = vpop.f32.mrf.mxu0
  %v880 = vadd.f32 %v580, %v879
  %881 = vmatmul.f32.gmra.mxu0 %v674
  %v882 = vpop.f32.mrf.mxu0
  %v883 = vadd.f32 %v580, %v882
  %884 = vmatmul.f32.gmra.mxu0 %v677
  %v885 = vpop.f32.mrf.mxu0
  %v886 = vadd.f32 %v580, %v885
  %887 = vmatmul.f32.gmra.mxu0 %v680
  %v888 = vpop.f32.mrf.mxu0
  %v889 = vadd.f32 %v580, %v888
  %890 = vmatmul.f32.gmra.mxu0 %v683
  %v891 = vpop.f32.mrf.mxu0
  %v892 = vadd.f32 %v580, %v891
  %893 = vmatmul.f32.gmra.mxu0 %v686
  %v894 = vpop.f32.mrf.mxu0
  %v895 = vadd.f32 %v580, %v894
  %896 = vmatmul.f32.gmra.mxu0 %v689
  %v897 = vpop.f32.mrf.mxu0
  %v898 = vadd.f32 %v580, %v897
  %899 = vmatmul.f32.gmra.mxu0 %v692
  %v900 = vpop.f32.mrf.mxu0
  %v901 = vadd.f32 %v580, %v900
  %902 = vmatmul.f32.gmra.mxu0 %v695
  %v903 = vpop.f32.mrf.mxu0
  %v904 = vadd.f32 %v580, %v903
  %905 = vmatmul.f32.gmra.mxu0 %v698
  %v906 = vpop.f32.mrf.mxu0
  %v907 = vadd.f32 %v580, %v906
  %908 = vmatmul.f32.gmra.mxu0 %v701
  %v909 = vpop.f32.mrf.mxu0
  %v910 = vadd.f32 %v580, %v909
  %911 = vmatmul.f32.gmra.mxu0 %v704
  %v912 = vpop.f32.mrf.mxu0
  %v913 = vadd.f32 %v580, %v912
  %914 = vmatmul.f32.gmra.mxu0 %v707
  %v915 = vpop.f32.mrf.mxu0
  %v916 = vadd.f32 %v580, %v915
  %917 = vmatmul.f32.gmra.mxu0 %v710
  %v918 = vpop.f32.mrf.mxu0
  %v919 = vadd.f32 %v580, %v918
  %920 = vmatmul.f32.gmra.mxu0 %v713
  %v921 = vpop.f32.mrf.mxu0
  %v922 = vadd.f32 %v580, %v921
  %923 = vmatmul.f32.gmra.mxu0 %v716
  %v924 = vpop.f32.mrf.mxu0
  %v925 = vadd.f32 %v580, %v924
  %926 = vmatmul.f32.gmra.mxu0 %v719
  %v927 = vpop.f32.mrf.mxu0
  %v928 = vadd.f32 %v580, %v927
  %929 = vmatmul.f32.gmra.mxu0 %v722
  %v930 = vpop.f32.mrf.mxu0
  %v931 = vadd.f32 %v580, %v930
  %932 = vmatmul.f32.gmra.mxu0 %v725
  %v933 = vpop.f32.mrf.mxu0
  %v934 = vadd.f32 %v580, %v933
  %935 = vmatmul.f32.gmra.mxu0 %v728
  %v936 = vpop.f32.mrf.mxu0
  %v937 = vadd.f32 %v580, %v936
  %938 = vmatmul.f32.gmra.mxu0 %v731
  %v939 = vpop.f32.mrf.mxu0
  %v940 = vadd.f32 %v580, %v939
  %941 = vmatmul.f32.gmra.mxu0 %v734
  %v942 = vpop.f32.mrf.mxu0
  %v943 = vadd.f32 %v580, %v942
  %944 = vmatmul.f32.gmra.mxu0 %v737
  %v945 = vpop.f32.mrf.mxu0
  %v946 = vadd.f32 %v580, %v945
  %947 = vmatmul.f32.gmra.mxu0 %v740
  %v948 = vpop.f32.mrf.mxu0
  %v949 = vadd.f32 %v580, %v948
  %950 = vmatmul.f32.gmra.mxu0 %v743
  %v951 = vpop.f32.mrf.mxu0
  %v952 = vadd.f32 %v580, %v951
  %953 = vmatmul.f32.gmra.mxu0 %v746
  %v954 = vpop.f32.mrf.mxu0
  %v955 = vadd.f32 %v580, %v954
  %956 = vmatmul.f32.gmra.mxu0 %v749
  %v957 = vpop.f32.mrf.mxu0
  %v958 = vadd.f32 %v580, %v957
  %959 = vmatmul.f32.gmra.mxu0 %v752
  %v960 = vpop.f32.mrf.mxu0
  %v961 = vadd.f32 %v580, %v960
  %962 = vmatmul.f32.gmra.mxu0 %v755
  %v963 = vpop.f32.mrf.mxu0
  %v964 = vadd.f32 %v580, %v963
  %965 = vmatmul.f32.gmra.mxu0 %v758
  %v966 = vpop.f32.mrf.mxu0
  %v967 = vadd.f32 %v580, %v966
  %968 = vmatmul.f32.gmra.mxu0 %v761
  %v969 = vpop.f32.mrf.mxu0
  %v970 = vadd.f32 %v580, %v969
  %971 = vmatmul.f32.gmra.mxu0 %v764
  %v972 = vpop.f32.mrf.mxu0
  %v973 = vadd.f32 %v580, %v972
  %974 = vmatmul.f32.gmra.mxu0 %v767
  %v975 = vpop.f32.mrf.mxu0
  %v976 = vadd.f32 %v580, %v975
  %977 = vmatmul.f32.gmra.mxu0 %v770
  %v978 = vpop.f32.mrf.mxu0
  %v979 = vadd.f32 %v580, %v978
  %980 = vmatmul.f32.gmra.mxu0 %v773
  %v981 = vpop.f32.mrf.mxu0
  %v982 = vadd.f32 %v580, %v981
  %983 = vdwg.mxu0
  %v984 = vmax.f32 %v793, 0.0
  %v985 = vmax.f32 %v796, 0.0
  %v986 = vmax.f32 %v799, 0.0
  %v987 = vmax.f32 %v802, 0.0
  %v988 = vmax.f32 %v805, 0.0
  %v989 = vmax.f32 %v808, 0.0
  %v990 = vmax.f32 %v811, 0.0
  %v991 = vmax.f32 %v814, 0.0
  %v992 = vmax.f32 %v817, 0.0
  %v993 = vmax.f32 %v820, 0.0
  %v994 = vmax.f32 %v823, 0.0
  %v995 = vmax.f32 %v826, 0.0
  %v996 = vmax.f32 %v829, 0.0
  %v997 = vmax.f32 %v832, 0.0
  %v998 = vmax.f32 %v835, 0.0
  %v999 = vmax.f32 %v838, 0.0
  %v1000 = vmax.f32 %v841, 0.0
  %v1001 = vmax.f32 %v844, 0.0
  %v1002 = vmax.f32 %v847, 0.0
  %v1003 = vmax.f32 %v850, 0.0
  %v1004 = vmax.f32 %v853, 0.0
  %v1005 = vmax.f32 %v856, 0.0
  %v1006 = vmax.f32 %v859, 0.0
  %v1007 = vmax.f32 %v862, 0.0
  %v1008 = vmax.f32 %v865, 0.0
  %v1009 = vmax.f32 %v868, 0.0
  %v1010 = vmax.f32 %v871, 0.0
  %v1011 = vmax.f32 %v874, 0.0
  %v1012 = vmax.f32 %v877, 0.0
  %v1013 = vmax.f32 %v880, 0.0
  %v1014 = vmax.f32 %v883, 0.0
  %v1015 = vmax.f32 %v886, 0.0
  %v1016 = vmax.f32 %v889, 0.0
  %v1017 = vmax.f32 %v892, 0.0
  %v1018 = vmax.f32 %v895, 0.0
  %v1019 = vmax.f32 %v898, 0.0
  %v1020 = vmax.f32 %v901, 0.0
  %v1021 = vmax.f32 %v904, 0.0
  %v1022 = vmax.f32 %v907, 0.0
  %v1023 = vmax.f32 %v910, 0.0
  %v1024 = vmax.f32 %v913, 0.0
  %v1025 = vmax.f32 %v916, 0.0
  %v1026 = vmax.f32 %v919, 0.0
  %v1027 = vmax.f32 %v922, 0.0
  %v1028 = vmax.f32 %v925, 0.0
  %v1029 = vmax.f32 %v928, 0.0
  %v1030 = vmax.f32 %v931, 0.0
  %v1031 = vmax.f32 %v934, 0.0
  %v1032 = vmax.f32 %v937, 0.0
  %v1033 = vmax.f32 %v940, 0.0
  %v1034 = vmax.f32 %v943, 0.0
  %v1035 = vmax.f32 %v946, 0.0
  %v1036 = vmax.f32 %v949, 0.0
  %v1037 = vmax.f32 %v952, 0.0
  %v1038 = vmax.f32 %v955, 0.0
  %v1039 = vmax.f32 %v958, 0.0
  %v1040 = vmax.f32 %v961, 0.0
  %v1041 = vmax.f32 %v964, 0.0
  %v1042 = vmax.f32 %v967, 0.0
  %v1043 = vmax.f32 %v970, 0.0
  %v1044 = vmax.f32 %v973, 0.0
  %v1045 = vmax.f32 %v976, 0.0
  %v1046 = vmax.f32 %v979, 0.0
  %v1047 = vmax.f32 %v982, 0.0
  %v1048 = vld [vmem:[%s5] sm:$0xff]
  %v1049 = vld [vmem:[%s5 + $0x8] sm:$0xff]
  %v1050 = vld [vmem:[%s5 + $0x10] sm:$0xff]
  %v1051 = vld [vmem:[%s5 + $0x18] sm:$0xff]
  %v1052 = vld [vmem:[%s6] sm:$0x1]
  %v1054 = vperm.slane %v1052, 0
  %vm1056 = vcmask 261120
  %v1058 = vsel %vm1056, %v984, 0
  %v1061 = vsel %vm1056, %v985, 0
  %v1064 = vsel %vm1056, %v986, 0
  %v1067 = vsel %vm1056, %v987, 0
  %v1070 = vsel %vm1056, %v988, 0
  %v1073 = vsel %vm1056, %v989, 0
  %v1076 = vsel %vm1056, %v990, 0
  %v1079 = vsel %vm1056, %v991, 0
  %v1082 = vsel %vm1056, %v992, 0
  %v1085 = vsel %vm1056, %v993, 0
  %v1088 = vsel %vm1056, %v994, 0
  %v1091 = vsel %vm1056, %v995, 0
  %v1094 = vsel %vm1056, %v996, 0
  %v1097 = vsel %vm1056, %v997, 0
  %v1100 = vsel %vm1056, %v998, 0
  %v1103 = vsel %vm1056, %v999, 0
  %v1106 = vsel %vm1056, %v1000, 0
  %v1109 = vsel %vm1056, %v1001, 0
  %v1112 = vsel %vm1056, %v1002, 0
  %v1115 = vsel %vm1056, %v1003, 0
  %v1118 = vsel %vm1056, %v1004, 0
  %v1121 = vsel %vm1056, %v1005, 0
  %v1124 = vsel %vm1056, %v1006, 0
  %v1127 = vsel %vm1056, %v1007, 0
  %v1130 = vsel %vm1056, %v1008, 0
  %v1133 = vsel %vm1056, %v1009, 0
  %v1136 = vsel %vm1056, %v1010, 0
  %v1139 = vsel %vm1056, %v1011, 0
  %v1142 = vsel %vm1056, %v1012, 0
  %v1145 = vsel %vm1056, %v1013, 0
  %v1148 = vsel %vm1056, %v1014, 0
  %v1151 = vsel %vm1056, %v1015, 0
  %v1154 = vsel %vm1056, %v1016, 0
  %v1157 = vsel %vm1056, %v1017, 0
  %v1160 = vsel %vm1056, %v1018, 0
  %v1163 = vsel %vm1056, %v1019, 0
  %v1166 = vsel %vm1056, %v1020, 0
  %v1169 = vsel %vm1056, %v1021, 0
  %v1172 = vsel %vm1056, %v1022, 0
  %v1175 = vsel %vm1056, %v1023, 0
  %v1178 = vsel %vm1056, %v1024, 0
  %v1181 = vsel %vm1056, %v1025, 0
  %v1184 = vsel %vm1056, %v1026, 0
  %v1187 = vsel %vm1056, %v1027, 0
  %v1190 = vsel %vm1056, %v1028, 0
  %v1193 = vsel %vm1056, %v1029, 0
  %v1196 = vsel %vm1056, %v1030, 0
  %v1199 = vsel %vm1056, %v1031, 0
  %v1202 = vsel %vm1056, %v1032, 0
  %v1205 = vsel %vm1056, %v1033, 0
  %v1208 = vsel %vm1056, %v1034, 0
  %v1211 = vsel %vm1056, %v1035, 0
  %v1214 = vsel %vm1056, %v1036, 0
  %v1217 = vsel %vm1056, %v1037, 0
  %v1220 = vsel %vm1056, %v1038, 0
  %v1223 = vsel %vm1056, %v1039, 0
  %v1226 = vsel %vm1056, %v1040, 0
  %v1229 = vsel %vm1056, %v1041, 0
  %v1232 = vsel %vm1056, %v1042, 0
  %v1235 = vsel %vm1056, %v1043, 0
  %v1238 = vsel %vm1056, %v1044, 0
  %v1241 = vsel %vm1056, %v1045, 0
  %v1244 = vsel %vm1056, %v1046, 0
  %v1247 = vsel %vm1056, %v1047, 0
  %1249 = vmatpush.msra.mxu0 0.0
  %1250 = vmatpush.msra.mxu0 0.0
  %1251 = vmatpush.msra.mxu0 0.0
  %1252 = vmatpush.msra.mxu0 0.0
  %1253 = vmatpush.msra.mxu0 0.0
  %1254 = vmatpush.msra.mxu0 0.0
  %1255 = vmatpush.msra.mxu0 0.0
  %1256 = vmatpush.msra.mxu0 0.0
  %1257 = vmatpush.msra.mxu0 0.0
  %1258 = vmatpush.msra.mxu0 0.0
  %1259 = vmatpush.msra.mxu0 0.0
  %1260 = vmatpush.msra.mxu0 0.0
  %1261 = vmatpush.msra.mxu0 %v1051
  %1262 = vmatpush.msra.mxu0 %v1050
  %1263 = vmatpush.msra.mxu0 %v1049
  %1264 = vmatpush.msra.mxu0 %v1048
  %1265 = vmatmul.f32.gmra.mxu0 %v1058
  %v1266 = vpop.f32.mrf.mxu0
  %v1267 = vadd.f32 %v1054, %v1266
  %1268 = vmatmul.f32.gmra.mxu0 %v1061
  %v1269 = vpop.f32.mrf.mxu0
  %v1270 = vadd.f32 %v1054, %v1269
  %1271 = vmatmul.f32.gmra.mxu0 %v1064
  %v1272 = vpop.f32.mrf.mxu0
  %v1273 = vadd.f32 %v1054, %v1272
  %1274 = vmatmul.f32.gmra.mxu0 %v1067
  %v1275 = vpop.f32.mrf.mxu0
  %v1276 = vadd.f32 %v1054, %v1275
  %1277 = vmatmul.f32.gmra.mxu0 %v1070
  %v1278 = vpop.f32.mrf.mxu0
  %v1279 = vadd.f32 %v1054, %v1278
  %1280 = vmatmul.f32.gmra.mxu0 %v1073
  %v1281 = vpop.f32.mrf.mxu0
  %v1282 = vadd.f32 %v1054, %v1281
  %1283 = vmatmul.f32.gmra.mxu0 %v1076
  %v1284 = vpop.f32.mrf.mxu0
  %v1285 = vadd.f32 %v1054, %v1284
  %1286 = vmatmul.f32.gmra.mxu0 %v1079
  %v1287 = vpop.f32.mrf.mxu0
  %v1288 = vadd.f32 %v1054, %v1287
  %1289 = vmatmul.f32.gmra.mxu0 %v1082
  %v1290 = vpop.f32.mrf.mxu0
  %v1291 = vadd.f32 %v1054, %v1290
  %1292 = vmatmul.f32.gmra.mxu0 %v1085
  %v1293 = vpop.f32.mrf.mxu0
  %v1294 = vadd.f32 %v1054, %v1293
  %1295 = vmatmul.f32.gmra.mxu0 %v1088
  %v1296 = vpop.f32.mrf.mxu0
  %v1297 = vadd.f32 %v1054, %v1296
  %1298 = vmatmul.f32.gmra.mxu0 %v1091
  %v1299 = vpop.f32.mrf.mxu0
  %v1300 = vadd.f32 %v1054, %v1299
  %1301 = vmatmul.f32.gmra.mxu0 %v1094
  %v1302 = vpop.f32.mrf.mxu0
  %v1303 = vadd.f32 %v1054, %v1302
  %1304 = vmatmul.f32.gmra.mxu0 %v1097
  %v1305 = vpop.f32.mrf.mxu0
  %v1306 = vadd.f32 %v1054, %v1305
  %1307 = vmatmul.f32.gmra.mxu0 %v1100
  %v1308 = vpop.f32.mrf.mxu0
  %v1309 = vadd.f32 %v1054, %v1308
  %1310 = vmatmul.f32.gmra.mxu0 %v1103
  %v1311 = vpop.f32.mrf.mxu0
  %v1312 = vadd.f32 %v1054, %v1311
  %1313 = vmatmul.f32.gmra.mxu0 %v1106
  %v1314 = vpop.f32.mrf.mxu0
  %v1315 = vadd.f32 %v1054, %v1314
  %1316 = vmatmul.f32.gmra.mxu0 %v1109
  %v1317 = vpop.f32.mrf.mxu0
  %v1318 = vadd.f32 %v1054, %v1317
  %1319 = vmatmul.f32.gmra.mxu0 %v1112
  %v1320 = vpop.f32.mrf.mxu0
  %v1321 = vadd.f32 %v1054, %v1320
  %1322 = vmatmul.f32.gmra.mxu0 %v1115
  %v1323 = vpop.f32.mrf.mxu0
  %v1324 = vadd.f32 %v1054, %v1323
  %1325 = vmatmul.f32.gmra.mxu0 %v1118
  %v1326 = vpop.f32.mrf.mxu0
  %v1327 = vadd.f32 %v1054, %v1326
  %1328 = vmatmul.f32.gmra.mxu0 %v1121
  %v1329 = vpop.f32.mrf.mxu0
  %v1330 = vadd.f32 %v1054, %v1329
  %1331 = vmatmul.f32.gmra.mxu0 %v1124
  %v1332 = vpop.f32.mrf.mxu0
  %v1333 = vadd.f32 %v1054, %v1332
  %1334 = vmatmul.f32.gmra.mxu0 %v1127
  %v1335 = vpop.f32.mrf.mxu0
  %v1336 = vadd.f32 %v1054, %v1335
  %1337 = vmatmul.f32.gmra.mxu0 %v1130
  %v1338 = vpop.f32.mrf.mxu0
  %v1339 = vadd.f32 %v1054, %v1338
  %1340 = vmatmul.f32.gmra.mxu0 %v1133
  %v1341 = vpop.f32.mrf.mxu0
  %v1342 = vadd.f32 %v1054, %v1341
  %1343 = vmatmul.f32.gmra.mxu0 %v1136
  %v1344 = vpop.f32.mrf.mxu0
  %v1345 = vadd.f32 %v1054, %v1344
  %1346 = vmatmul.f32.gmra.mxu0 %v1139
  %v1347 = vpop.f32.mrf.mxu0
  %v1348 = vadd.f32 %v1054, %v1347
  %1349 = vmatmul.f32.gmra.mxu0 %v1142
  %v1350 = vpop.f32.mrf.mxu0
  %v1351 = vadd.f32 %v1054, %v1350
  %1352 = vmatmul.f32.gmra.mxu0 %v1145
  %v1353 = vpop.f32.mrf.mxu0
  %v1354 = vadd.f32 %v1054, %v1353
  %1355 = vmatmul.f32.gmra.mxu0 %v1148
  %v1356 = vpop.f32.mrf.mxu0
  %v1357 = vadd.f32 %v1054, %v1356
  %1358 = vmatmul.f32.gmra.mxu0 %v1151
  %v1359 = vpop.f32.mrf.mxu0
  %v1360 = vadd.f32 %v1054, %v1359
  %1361 = vmatmul.f32.gmra.mxu0 %v1154
  %v1362 = vpop.f32.mrf.mxu0
  %v1363 = vadd.f32 %v1054, %v1362
  %1364 = vmatmul.f32.gmra.mxu0 %v1157
  %v1365 = vpop.f32.mrf.mxu0
  %v1366 = vadd.f32 %v1054, %v1365
  %1367 = vmatmul.f32.gmra.mxu0 %v1160
  %v1368 = vpop.f32.mrf.mxu0
  %v1369 = vadd.f32 %v1054, %v1368
  %1370 = vmatmul.f32.gmra.mxu0 %v1163
  %v1371 = vpop.f32.mrf.mxu0
  %v1372 = vadd.f32 %v1054, %v1371
  %1373 = vmatmul.f32.gmra.mxu0 %v1166
  %v1374 = vpop.f32.mrf.mxu0
  %v1375 = vadd.f32 %v1054, %v1374
  %1376 = vmatmul.f32.gmra.mxu0 %v1169
  %v1377 = vpop.f32.mrf.mxu0
  %v1378 = vadd.f32 %v1054, %v1377
  %1379 = vmatmul.f32.gmra.mxu0 %v1172
  %v1380 = vpop.f32.mrf.mxu0
  %v1381 = vadd.f32 %v1054, %v1380
  %1382 = vmatmul.f32.gmra.mxu0 %v1175
  %v1383 = vpop.f32.mrf.mxu0
  %v1384 = vadd.f32 %v1054, %v1383
  %1385 = vmatmul.f32.gmra.mxu0 %v1178
  %v1386 = vpop.f32.mrf.mxu0
  %v1387 = vadd.f32 %v1054, %v1386
  %1388 = vmatmul.f32.gmra.mxu0 %v1181
  %v1389 = vpop.f32.mrf.mxu0
  %v1390 = vadd.f32 %v1054, %v1389
  %1391 = vmatmul.f32.gmra.mxu0 %v1184
  %v1392 = vpop.f32.mrf.mxu0
  %v1393 = vadd.f32 %v1054, %v1392
  %1394 = vmatmul.f32.gmra.mxu0 %v1187
  %v1395 = vpop.f32.mrf.mxu0
  %v1396 = vadd.f32 %v1054, %v1395
  %1397 = vmatmul.f32.gmra.mxu0 %v1190
  %v1398 = vpop.f32.mrf.mxu0
  %v1399 = vadd.f32 %v1054, %v1398
  %1400 = vmatmul.f32.gmra.mxu0 %v1193
  %v1401 = vpop.f32.mrf.mxu0
  %v1402 = vadd.f32 %v1054, %v1401
  %1403 = vmatmul.f32.gmra.mxu0 %v1196
  %v1404 = vpop.f32.mrf.mxu0
  %v1405 = vadd.f32 %v1054, %v1404
  %1406 = vmatmul.f32.gmra.mxu0 %v1199
  %v1407 = vpop.f32.mrf.mxu0
  %v1408 = vadd.f32 %v1054, %v1407
  %1409 = vmatmul.f32.gmra.mxu0 %v1202
  %v1410 = vpop.f32.mrf.mxu0
  %v1411 = vadd.f32 %v1054, %v1410
  %1412 = vmatmul.f32.gmra.mxu0 %v1205
  %v1413 = vpop.f32.mrf.mxu0
  %v1414 = vadd.f32 %v1054, %v1413
  %1415 = vmatmul.f32.gmra.mxu0 %v1208
  %v1416 = vpop.f32.mrf.mxu0
  %v1417 = vadd.f32 %v1054, %v1416
  %1418 = vmatmul.f32.gmra.mxu0 %v1211
  %v1419 = vpop.f32.mrf.mxu0
  %v1420 = vadd.f32 %v1054, %v1419
  %1421 = vmatmul.f32.gmra.mxu0 %v1214
  %v1422 = vpop.f32.mrf.mxu0
  %v1423 = vadd.f32 %v1054, %v1422
  %1424 = vmatmul.f32.gmra.mxu0 %v1217
  %v1425 = vpop.f32.mrf.mxu0
  %v1426 = vadd.f32 %v1054, %v1425
  %1427 = vmatmul.f32.gmra.mxu0 %v1220
  %v1428 = vpop.f32.mrf.mxu0
  %v1429 = vadd.f32 %v1054, %v1428
  %1430 = vmatmul.f32.gmra.mxu0 %v1223
  %v1431 = vpop.f32.mrf.mxu0
  %v1432 = vadd.f32 %v1054, %v1431
  %1433 = vmatmul.f32.gmra.mxu0 %v1226
  %v1434 = vpop.f32.mrf.mxu0
  %v1435 = vadd.f32 %v1054, %v1434
  %1436 = vmatmul.f32.gmra.mxu0 %v1229
  %v1437 = vpop.f32.mrf.mxu0
  %v1438 = vadd.f32 %v1054, %v1437
  %1439 = vmatmul.f32.gmra.mxu0 %v1232
  %v1440 = vpop.f32.mrf.mxu0
  %v1441 = vadd.f32 %v1054, %v1440
  %1442 = vmatmul.f32.gmra.mxu0 %v1235
  %v1443 = vpop.f32.mrf.mxu0
  %v1444 = vadd.f32 %v1054, %v1443
  %1445 = vmatmul.f32.gmra.mxu0 %v1238
  %v1446 = vpop.f32.mrf.mxu0
  %v1447 = vadd.f32 %v1054, %v1446
  %1448 = vmatmul.f32.gmra.mxu0 %v1241
  %v1449 = vpop.f32.mrf.mxu0
  %v1450 = vadd.f32 %v1054, %v1449
  %1451 = vmatmul.f32.gmra.mxu0 %v1244
  %v1452 = vpop.f32.mrf.mxu0
  %v1453 = vadd.f32 %v1054, %v1452
  %1454 = vmatmul.f32.gmra.mxu0 %v1247
  %v1455 = vpop.f32.mrf.mxu0
  %v1456 = vadd.f32 %v1054, %v1455
  %1457 = vdwg.mxu0
  %v1458 = vxor.u32 %v1267, 2147483648
  %v1459 = vxor.u32 %v1270, 2147483648
  %v1460 = vxor.u32 %v1273, 2147483648
  %v1461 = vxor.u32 %v1276, 2147483648
  %v1462 = vxor.u32 %v1279, 2147483648
  %v1463 = vxor.u32 %v1282, 2147483648
  %v1464 = vxor.u32 %v1285, 2147483648
  %v1465 = vxor.u32 %v1288, 2147483648
  %v1466 = vxor.u32 %v1291, 2147483648
  %v1467 = vxor.u32 %v1294, 2147483648
  %v1468 = vxor.u32 %v1297, 2147483648
  %v1469 = vxor.u32 %v1300, 2147483648
  %v1470 = vxor.u32 %v1303, 2147483648
  %v1471 = vxor.u32 %v1306, 2147483648
  %v1472 = vxor.u32 %v1309, 2147483648
  %v1473 = vxor.u32 %v1312, 2147483648
  %v1474 = vxor.u32 %v1315, 2147483648
  %v1475 = vxor.u32 %v1318, 2147483648
  %v1476 = vxor.u32 %v1321, 2147483648
  %v1477 = vxor.u32 %v1324, 2147483648
  %v1478 = vxor.u32 %v1327, 2147483648
  %v1479 = vxor.u32 %v1330, 2147483648
  %v1480 = vxor.u32 %v1333, 2147483648
  %v1481 = vxor.u32 %v1336, 2147483648
  %v1482 = vxor.u32 %v1339, 2147483648
  %v1483 = vxor.u32 %v1342, 2147483648
  %v1484 = vxor.u32 %v1345, 2147483648
  %v1485 = vxor.u32 %v1348, 2147483648
  %v1486 = vxor.u32 %v1351, 2147483648
  %v1487 = vxor.u32 %v1354, 2147483648
  %v1488 = vxor.u32 %v1357, 2147483648
  %v1489 = vxor.u32 %v1360, 2147483648
  %v1490 = vxor.u32 %v1363, 2147483648
  %v1491 = vxor.u32 %v1366, 2147483648
  %v1492 = vxor.u32 %v1369, 2147483648
  %v1493 = vxor.u32 %v1372, 2147483648
  %v1494 = vxor.u32 %v1375, 2147483648
  %v1495 = vxor.u32 %v1378, 2147483648
  %v1496 = vxor.u32 %v1381, 2147483648
  %v1497 = vxor.u32 %v1384, 2147483648
  %v1498 = vxor.u32 %v1387, 2147483648
  %v1499 = vxor.u32 %v1390, 2147483648
  %v1500 = vxor.u32 %v1393, 2147483648
  %v1501 = vxor.u32 %v1396, 2147483648
  %v1502 = vxor.u32 %v1399, 2147483648
  %v1503 = vxor.u32 %v1402, 2147483648
  %v1504 = vxor.u32 %v1405, 2147483648
  %v1505 = vxor.u32 %v1408, 2147483648
  %v1506 = vxor.u32 %v1411, 2147483648
  %v1507 = vxor.u32 %v1414, 2147483648
  %v1508 = vxor.u32 %v1417, 2147483648
  %v1509 = vxor.u32 %v1420, 2147483648
  %v1510 = vxor.u32 %v1423, 2147483648
  %v1511 = vxor.u32 %v1426, 2147483648
  %v1512 = vxor.u32 %v1429, 2147483648
  %v1513 = vxor.u32 %v1432, 2147483648
  %v1514 = vxor.u32 %v1435, 2147483648
  %v1515 = vxor.u32 %v1438, 2147483648
  %v1516 = vxor.u32 %v1441, 2147483648
  %v1517 = vxor.u32 %v1444, 2147483648
  %v1518 = vxor.u32 %v1447, 2147483648
  %v1519 = vxor.u32 %v1450, 2147483648
  %v1520 = vxor.u32 %v1453, 2147483648
  %v1521 = vxor.u32 %v1456, 2147483648
  %v1522 = vmul.f32 %v1458, 1.442695
  %v1523 = vpow.pop %v1522
  %v1524 = vmul.f32 %v1459, 1.442695
  %v1525 = vpow.pop %v1524
  %v1526 = vmul.f32 %v1460, 1.442695
  %v1527 = vpow.pop %v1526
  %v1528 = vmul.f32 %v1461, 1.442695
  %v1529 = vpow.pop %v1528
  %v1530 = vmul.f32 %v1462, 1.442695
  %v1531 = vpow.pop %v1530
  %v1532 = vmul.f32 %v1463, 1.442695
  %v1533 = vpow.pop %v1532
  %v1534 = vmul.f32 %v1464, 1.442695
  %v1535 = vpow.pop %v1534
  %v1536 = vmul.f32 %v1465, 1.442695
  %v1537 = vpow.pop %v1536
  %v1538 = vmul.f32 %v1466, 1.442695
  %v1539 = vpow.pop %v1538
  %v1540 = vmul.f32 %v1467, 1.442695
  %v1541 = vpow.pop %v1540
  %v1542 = vmul.f32 %v1468, 1.442695
  %v1543 = vpow.pop %v1542
  %v1544 = vmul.f32 %v1469, 1.442695
  %v1545 = vpow.pop %v1544
  %v1546 = vmul.f32 %v1470, 1.442695
  %v1547 = vpow.pop %v1546
  %v1548 = vmul.f32 %v1471, 1.442695
  %v1549 = vpow.pop %v1548
  %v1550 = vmul.f32 %v1472, 1.442695
  %v1551 = vpow.pop %v1550
  %v1552 = vmul.f32 %v1473, 1.442695
  %v1553 = vpow.pop %v1552
  %v1554 = vmul.f32 %v1474, 1.442695
  %v1555 = vpow.pop %v1554
  %v1556 = vmul.f32 %v1475, 1.442695
  %v1557 = vpow.pop %v1556
  %v1558 = vmul.f32 %v1476, 1.442695
  %v1559 = vpow.pop %v1558
  %v1560 = vmul.f32 %v1477, 1.442695
  %v1561 = vpow.pop %v1560
  %v1562 = vmul.f32 %v1478, 1.442695
  %v1563 = vpow.pop %v1562
  %v1564 = vmul.f32 %v1479, 1.442695
  %v1565 = vpow.pop %v1564
  %v1566 = vmul.f32 %v1480, 1.442695
  %v1567 = vpow.pop %v1566
  %v1568 = vmul.f32 %v1481, 1.442695
  %v1569 = vpow.pop %v1568
  %v1570 = vmul.f32 %v1482, 1.442695
  %v1571 = vpow.pop %v1570
  %v1572 = vmul.f32 %v1483, 1.442695
  %v1573 = vpow.pop %v1572
  %v1574 = vmul.f32 %v1484, 1.442695
  %v1575 = vpow.pop %v1574
  %v1576 = vmul.f32 %v1485, 1.442695
  %v1577 = vpow.pop %v1576
  %v1578 = vmul.f32 %v1486, 1.442695
  %v1579 = vpow.pop %v1578
  %v1580 = vmul.f32 %v1487, 1.442695
  %v1581 = vpow.pop %v1580
  %v1582 = vmul.f32 %v1488, 1.442695
  %v1583 = vpow.pop %v1582
  %v1584 = vmul.f32 %v1489, 1.442695
  %v1585 = vpow.pop %v1584
  %v1586 = vmul.f32 %v1490, 1.442695
  %v1587 = vpow.pop %v1586
  %v1588 = vmul.f32 %v1491, 1.442695
  %v1589 = vpow.pop %v1588
  %v1590 = vmul.f32 %v1492, 1.442695
  %v1591 = vpow.pop %v1590
  %v1592 = vmul.f32 %v1493, 1.442695
  %v1593 = vpow.pop %v1592
  %v1594 = vmul.f32 %v1494, 1.442695
  %v1595 = vpow.pop %v1594
  %v1596 = vmul.f32 %v1495, 1.442695
  %v1597 = vpow.pop %v1596
  %v1598 = vmul.f32 %v1496, 1.442695
  %v1599 = vpow.pop %v1598
  %v1600 = vmul.f32 %v1497, 1.442695
  %v1601 = vpow.pop %v1600
  %v1602 = vmul.f32 %v1498, 1.442695
  %v1603 = vpow.pop %v1602
  %v1604 = vmul.f32 %v1499, 1.442695
  %v1605 = vpow.pop %v1604
  %v1606 = vmul.f32 %v1500, 1.442695
  %v1607 = vpow.pop %v1606
  %v1608 = vmul.f32 %v1501, 1.442695
  %v1609 = vpow.pop %v1608
  %v1610 = vmul.f32 %v1502, 1.442695
  %v1611 = vpow.pop %v1610
  %v1612 = vmul.f32 %v1503, 1.442695
  %v1613 = vpow.pop %v1612
  %v1614 = vmul.f32 %v1504, 1.442695
  %v1615 = vpow.pop %v1614
  %v1616 = vmul.f32 %v1505, 1.442695
  %v1617 = vpow.pop %v1616
  %v1618 = vmul.f32 %v1506, 1.442695
  %v1619 = vpow.pop %v1618
  %v1620 = vmul.f32 %v1507, 1.442695
  %v1621 = vpow.pop %v1620
  %v1622 = vmul.f32 %v1508, 1.442695
  %v1623 = vpow.pop %v1622
  %v1624 = vmul.f32 %v1509, 1.442695
  %v1625 = vpow.pop %v1624
  %v1626 = vmul.f32 %v1510, 1.442695
  %v1627 = vpow.pop %v1626
  %v1628 = vmul.f32 %v1511, 1.442695
  %v1629 = vpow.pop %v1628
  %v1630 = vmul.f32 %v1512, 1.442695
  %v1631 = vpow.pop %v1630
  %v1632 = vmul.f32 %v1513, 1.442695
  %v1633 = vpow.pop %v1632
  %v1634 = vmul.f32 %v1514, 1.442695
  %v1635 = vpow.pop %v1634
  %v1636 = vmul.f32 %v1515, 1.442695
  %v1637 = vpow.pop %v1636
  %v1638 = vmul.f32 %v1516, 1.442695
  %v1639 = vpow.pop %v1638
  %v1640 = vmul.f32 %v1517, 1.442695
  %v1641 = vpow.pop %v1640
  %v1642 = vmul.f32 %v1518, 1.442695
  %v1643 = vpow.pop %v1642
  %v1644 = vmul.f32 %v1519, 1.442695
  %v1645 = vpow.pop %v1644
  %v1646 = vmul.f32 %v1520, 1.442695
  %v1647 = vpow.pop %v1646
  %v1648 = vmul.f32 %v1521, 1.442695
  %v1649 = vpow.pop %v1648
  %v1650 = vadd.f32 %v1523, 1.0
  %v1651 = vadd.f32 %v1525, 1.0
  %v1652 = vadd.f32 %v1527, 1.0
  %v1653 = vadd.f32 %v1529, 1.0
  %v1654 = vadd.f32 %v1531, 1.0
  %v1655 = vadd.f32 %v1533, 1.0
  %v1656 = vadd.f32 %v1535, 1.0
  %v1657 = vadd.f32 %v1537, 1.0
  %v1658 = vadd.f32 %v1539, 1.0
  %v1659 = vadd.f32 %v1541, 1.0
  %v1660 = vadd.f32 %v1543, 1.0
  %v1661 = vadd.f32 %v1545, 1.0
  %v1662 = vadd.f32 %v1547, 1.0
  %v1663 = vadd.f32 %v1549, 1.0
  %v1664 = vadd.f32 %v1551, 1.0
  %v1665 = vadd.f32 %v1553, 1.0
  %v1666 = vadd.f32 %v1555, 1.0
  %v1667 = vadd.f32 %v1557, 1.0
  %v1668 = vadd.f32 %v1559, 1.0
  %v1669 = vadd.f32 %v1561, 1.0
  %v1670 = vadd.f32 %v1563, 1.0
  %v1671 = vadd.f32 %v1565, 1.0
  %v1672 = vadd.f32 %v1567, 1.0
  %v1673 = vadd.f32 %v1569, 1.0
  %v1674 = vadd.f32 %v1571, 1.0
  %v1675 = vadd.f32 %v1573, 1.0
  %v1676 = vadd.f32 %v1575, 1.0
  %v1677 = vadd.f32 %v1577, 1.0
  %v1678 = vadd.f32 %v1579, 1.0
  %v1679 = vadd.f32 %v1581, 1.0
  %v1680 = vadd.f32 %v1583, 1.0
  %v1681 = vadd.f32 %v1585, 1.0
  %v1682 = vadd.f32 %v1587, 1.0
  %v1683 = vadd.f32 %v1589, 1.0
  %v1684 = vadd.f32 %v1591, 1.0
  %v1685 = vadd.f32 %v1593, 1.0
  %v1686 = vadd.f32 %v1595, 1.0
  %v1687 = vadd.f32 %v1597, 1.0
  %v1688 = vadd.f32 %v1599, 1.0
  %v1689 = vadd.f32 %v1601, 1.0
  %v1690 = vadd.f32 %v1603, 1.0
  %v1691 = vadd.f32 %v1605, 1.0
  %v1692 = vadd.f32 %v1607, 1.0
  %v1693 = vadd.f32 %v1609, 1.0
  %v1694 = vadd.f32 %v1611, 1.0
  %v1695 = vadd.f32 %v1613, 1.0
  %v1696 = vadd.f32 %v1615, 1.0
  %v1697 = vadd.f32 %v1617, 1.0
  %v1698 = vadd.f32 %v1619, 1.0
  %v1699 = vadd.f32 %v1621, 1.0
  %v1700 = vadd.f32 %v1623, 1.0
  %v1701 = vadd.f32 %v1625, 1.0
  %v1702 = vadd.f32 %v1627, 1.0
  %v1703 = vadd.f32 %v1629, 1.0
  %v1704 = vadd.f32 %v1631, 1.0
  %v1705 = vadd.f32 %v1633, 1.0
  %v1706 = vadd.f32 %v1635, 1.0
  %v1707 = vadd.f32 %v1637, 1.0
  %v1708 = vadd.f32 %v1639, 1.0
  %v1709 = vadd.f32 %v1641, 1.0
  %v1710 = vadd.f32 %v1643, 1.0
  %v1711 = vadd.f32 %v1645, 1.0
  %v1712 = vadd.f32 %v1647, 1.0
  %v1713 = vadd.f32 %v1649, 1.0
  %v1714 = vrcp.pop %v1650
  %v1715 = vmul.f32 %v1650, %v1714
  %v1716 = vsub.f32 1.0, %v1715
  %v1717 = vmul.f32 %v1714, %v1716
  %v1718 = vadd.f32 %v1714, %v1717
  %vm1719 = vweird.f32 %v1650
  %vm1720 = vweird.f32 %v1714
  %vm1721 = vmor %vm1719, %vm1720
  %v1722 = vsel %vm1721, %v1714, %v1718
  %v1723 = vand.u32 2147483647, %v1650
  %vm1724 = vcmp.eq.f32.partialorder %v1723, 8.507059e+37
  %v1725 = vand.u32 %v1650, 2147483648
  %v1726 = vor.u32 1.1754944e-38, %v1725
  %v1727 = vsel %vm1724, %v1726, %v1722
  %v1728 = vmul.f32 1.0, %v1727
  %v1729 = vrcp.pop %v1651
  %v1730 = vmul.f32 %v1651, %v1729
  %v1731 = vsub.f32 1.0, %v1730
  %v1732 = vmul.f32 %v1729, %v1731
  %v1733 = vadd.f32 %v1729, %v1732
  %vm1734 = vweird.f32 %v1651
  %vm1735 = vweird.f32 %v1729
  %vm1736 = vmor %vm1734, %vm1735
  %v1737 = vsel %vm1736, %v1729, %v1733
  %v1738 = vand.u32 2147483647, %v1651
  %vm1739 = vcmp.eq.f32.partialorder %v1738, 8.507059e+37
  %v1740 = vand.u32 %v1651, 2147483648
  %v1741 = vor.u32 1.1754944e-38, %v1740
  %v1742 = vsel %vm1739, %v1741, %v1737
  %v1743 = vmul.f32 1.0, %v1742
  %v1744 = vrcp.pop %v1652
  %v1745 = vmul.f32 %v1652, %v1744
  %v1746 = vsub.f32 1.0, %v1745
  %v1747 = vmul.f32 %v1744, %v1746
  %v1748 = vadd.f32 %v1744, %v1747
  %vm1749 = vweird.f32 %v1652
  %vm1750 = vweird.f32 %v1744
  %vm1751 = vmor %vm1749, %vm1750
  %v1752 = vsel %vm1751, %v1744, %v1748
  %v1753 = vand.u32 2147483647, %v1652
  %vm1754 = vcmp.eq.f32.partialorder %v1753, 8.507059e+37
  %v1755 = vand.u32 %v1652, 2147483648
  %v1756 = vor.u32 1.1754944e-38, %v1755
  %v1757 = vsel %vm1754, %v1756, %v1752
  %v1758 = vmul.f32 1.0, %v1757
  %v1759 = vrcp.pop %v1653
  %v1760 = vmul.f32 %v1653, %v1759
  %v1761 = vsub.f32 1.0, %v1760
  %v1762 = vmul.f32 %v1759, %v1761
  %v1763 = vadd.f32 %v1759, %v1762
  %vm1764 = vweird.f32 %v1653
  %vm1765 = vweird.f32 %v1759
  %vm1766 = vmor %vm1764, %vm1765
  %v1767 = vsel %vm1766, %v1759, %v1763
  %v1768 = vand.u32 2147483647, %v1653
  %vm1769 = vcmp.eq.f32.partialorder %v1768, 8.507059e+37
  %v1770 = vand.u32 %v1653, 2147483648
  %v1771 = vor.u32 1.1754944e-38, %v1770
  %v1772 = vsel %vm1769, %v1771, %v1767
  %v1773 = vmul.f32 1.0, %v1772
  %v1774 = vrcp.pop %v1654
  %v1775 = vmul.f32 %v1654, %v1774
  %v1776 = vsub.f32 1.0, %v1775
  %v1777 = vmul.f32 %v1774, %v1776
  %v1778 = vadd.f32 %v1774, %v1777
  %vm1779 = vweird.f32 %v1654
  %vm1780 = vweird.f32 %v1774
  %vm1781 = vmor %vm1779, %vm1780
  %v1782 = vsel %vm1781, %v1774, %v1778
  %v1783 = vand.u32 2147483647, %v1654
  %vm1784 = vcmp.eq.f32.partialorder %v1783, 8.507059e+37
  %v1785 = vand.u32 %v1654, 2147483648
  %v1786 = vor.u32 1.1754944e-38, %v1785
  %v1787 = vsel %vm1784, %v1786, %v1782
  %v1788 = vmul.f32 1.0, %v1787
  %v1789 = vrcp.pop %v1655
  %v1790 = vmul.f32 %v1655, %v1789
  %v1791 = vsub.f32 1.0, %v1790
  %v1792 = vmul.f32 %v1789, %v1791
  %v1793 = vadd.f32 %v1789, %v1792
  %vm1794 = vweird.f32 %v1655
  %vm1795 = vweird.f32 %v1789
  %vm1796 = vmor %vm1794, %vm1795
  %v1797 = vsel %vm1796, %v1789, %v1793
  %v1798 = vand.u32 2147483647, %v1655
  %vm1799 = vcmp.eq.f32.partialorder %v1798, 8.507059e+37
  %v1800 = vand.u32 %v1655, 2147483648
  %v1801 = vor.u32 1.1754944e-38, %v1800
  %v1802 = vsel %vm1799, %v1801, %v1797
  %v1803 = vmul.f32 1.0, %v1802
  %v1804 = vrcp.pop %v1656
  %v1805 = vmul.f32 %v1656, %v1804
  %v1806 = vsub.f32 1.0, %v1805
  %v1807 = vmul.f32 %v1804, %v1806
  %v1808 = vadd.f32 %v1804, %v1807
  %vm1809 = vweird.f32 %v1656
  %vm1810 = vweird.f32 %v1804
  %vm1811 = vmor %vm1809, %vm1810
  %v1812 = vsel %vm1811, %v1804, %v1808
  %v1813 = vand.u32 2147483647, %v1656
  %vm1814 = vcmp.eq.f32.partialorder %v1813, 8.507059e+37
  %v1815 = vand.u32 %v1656, 2147483648
  %v1816 = vor.u32 1.1754944e-38, %v1815
  %v1817 = vsel %vm1814, %v1816, %v1812
  %v1818 = vmul.f32 1.0, %v1817
  %v1819 = vrcp.pop %v1657
  %v1820 = vmul.f32 %v1657, %v1819
  %v1821 = vsub.f32 1.0, %v1820
  %v1822 = vmul.f32 %v1819, %v1821
  %v1823 = vadd.f32 %v1819, %v1822
  %vm1824 = vweird.f32 %v1657
  %vm1825 = vweird.f32 %v1819
  %vm1826 = vmor %vm1824, %vm1825
  %v1827 = vsel %vm1826, %v1819, %v1823
  %v1828 = vand.u32 2147483647, %v1657
  %vm1829 = vcmp.eq.f32.partialorder %v1828, 8.507059e+37
  %v1830 = vand.u32 %v1657, 2147483648
  %v1831 = vor.u32 1.1754944e-38, %v1830
  %v1832 = vsel %vm1829, %v1831, %v1827
  %v1833 = vmul.f32 1.0, %v1832
  %v1834 = vrcp.pop %v1658
  %v1835 = vmul.f32 %v1658, %v1834
  %v1836 = vsub.f32 1.0, %v1835
  %v1837 = vmul.f32 %v1834, %v1836
  %v1838 = vadd.f32 %v1834, %v1837
  %vm1839 = vweird.f32 %v1658
  %vm1840 = vweird.f32 %v1834
  %vm1841 = vmor %vm1839, %vm1840
  %v1842 = vsel %vm1841, %v1834, %v1838
  %v1843 = vand.u32 2147483647, %v1658
  %vm1844 = vcmp.eq.f32.partialorder %v1843, 8.507059e+37
  %v1845 = vand.u32 %v1658, 2147483648
  %v1846 = vor.u32 1.1754944e-38, %v1845
  %v1847 = vsel %vm1844, %v1846, %v1842
  %v1848 = vmul.f32 1.0, %v1847
  %v1849 = vrcp.pop %v1659
  %v1850 = vmul.f32 %v1659, %v1849
  %v1851 = vsub.f32 1.0, %v1850
  %v1852 = vmul.f32 %v1849, %v1851
  %v1853 = vadd.f32 %v1849, %v1852
  %vm1854 = vweird.f32 %v1659
  %vm1855 = vweird.f32 %v1849
  %vm1856 = vmor %vm1854, %vm1855
  %v1857 = vsel %vm1856, %v1849, %v1853
  %v1858 = vand.u32 2147483647, %v1659
  %vm1859 = vcmp.eq.f32.partialorder %v1858, 8.507059e+37
  %v1860 = vand.u32 %v1659, 2147483648
  %v1861 = vor.u32 1.1754944e-38, %v1860
  %v1862 = vsel %vm1859, %v1861, %v1857
  %v1863 = vmul.f32 1.0, %v1862
  %v1864 = vrcp.pop %v1660
  %v1865 = vmul.f32 %v1660, %v1864
  %v1866 = vsub.f32 1.0, %v1865
  %v1867 = vmul.f32 %v1864, %v1866
  %v1868 = vadd.f32 %v1864, %v1867
  %vm1869 = vweird.f32 %v1660
  %vm1870 = vweird.f32 %v1864
  %vm1871 = vmor %vm1869, %vm1870
  %v1872 = vsel %vm1871, %v1864, %v1868
  %v1873 = vand.u32 2147483647, %v1660
  %vm1874 = vcmp.eq.f32.partialorder %v1873, 8.507059e+37
  %v1875 = vand.u32 %v1660, 2147483648
  %v1876 = vor.u32 1.1754944e-38, %v1875
  %v1877 = vsel %vm1874, %v1876, %v1872
  %v1878 = vmul.f32 1.0, %v1877
  %v1879 = vrcp.pop %v1661
  %v1880 = vmul.f32 %v1661, %v1879
  %v1881 = vsub.f32 1.0, %v1880
  %v1882 = vmul.f32 %v1879, %v1881
  %v1883 = vadd.f32 %v1879, %v1882
  %vm1884 = vweird.f32 %v1661
  %vm1885 = vweird.f32 %v1879
  %vm1886 = vmor %vm1884, %vm1885
  %v1887 = vsel %vm1886, %v1879, %v1883
  %v1888 = vand.u32 2147483647, %v1661
  %vm1889 = vcmp.eq.f32.partialorder %v1888, 8.507059e+37
  %v1890 = vand.u32 %v1661, 2147483648
  %v1891 = vor.u32 1.1754944e-38, %v1890
  %v1892 = vsel %vm1889, %v1891, %v1887
  %v1893 = vmul.f32 1.0, %v1892
  %v1894 = vrcp.pop %v1662
  %v1895 = vmul.f32 %v1662, %v1894
  %v1896 = vsub.f32 1.0, %v1895
  %v1897 = vmul.f32 %v1894, %v1896
  %v1898 = vadd.f32 %v1894, %v1897
  %vm1899 = vweird.f32 %v1662
  %vm1900 = vweird.f32 %v1894
  %vm1901 = vmor %vm1899, %vm1900
  %v1902 = vsel %vm1901, %v1894, %v1898
  %v1903 = vand.u32 2147483647, %v1662
  %vm1904 = vcmp.eq.f32.partialorder %v1903, 8.507059e+37
  %v1905 = vand.u32 %v1662, 2147483648
  %v1906 = vor.u32 1.1754944e-38, %v1905
  %v1907 = vsel %vm1904, %v1906, %v1902
  %v1908 = vmul.f32 1.0, %v1907
  %v1909 = vrcp.pop %v1663
  %v1910 = vmul.f32 %v1663, %v1909
  %v1911 = vsub.f32 1.0, %v1910
  %v1912 = vmul.f32 %v1909, %v1911
  %v1913 = vadd.f32 %v1909, %v1912
  %vm1914 = vweird.f32 %v1663
  %vm1915 = vweird.f32 %v1909
  %vm1916 = vmor %vm1914, %vm1915
  %v1917 = vsel %vm1916, %v1909, %v1913
  %v1918 = vand.u32 2147483647, %v1663
  %vm1919 = vcmp.eq.f32.partialorder %v1918, 8.507059e+37
  %v1920 = vand.u32 %v1663, 2147483648
  %v1921 = vor.u32 1.1754944e-38, %v1920
  %v1922 = vsel %vm1919, %v1921, %v1917
  %v1923 = vmul.f32 1.0, %v1922
  %v1924 = vrcp.pop %v1664
  %v1925 = vmul.f32 %v1664, %v1924
  %v1926 = vsub.f32 1.0, %v1925
  %v1927 = vmul.f32 %v1924, %v1926
  %v1928 = vadd.f32 %v1924, %v1927
  %vm1929 = vweird.f32 %v1664
  %vm1930 = vweird.f32 %v1924
  %vm1931 = vmor %vm1929, %vm1930
  %v1932 = vsel %vm1931, %v1924, %v1928
  %v1933 = vand.u32 2147483647, %v1664
  %vm1934 = vcmp.eq.f32.partialorder %v1933, 8.507059e+37
  %v1935 = vand.u32 %v1664, 2147483648
  %v1936 = vor.u32 1.1754944e-38, %v1935
  %v1937 = vsel %vm1934, %v1936, %v1932
  %v1938 = vmul.f32 1.0, %v1937
  %v1939 = vrcp.pop %v1665
  %v1940 = vmul.f32 %v1665, %v1939
  %v1941 = vsub.f32 1.0, %v1940
  %v1942 = vmul.f32 %v1939, %v1941
  %v1943 = vadd.f32 %v1939, %v1942
  %vm1944 = vweird.f32 %v1665
  %vm1945 = vweird.f32 %v1939
  %vm1946 = vmor %vm1944, %vm1945
  %v1947 = vsel %vm1946, %v1939, %v1943
  %v1948 = vand.u32 2147483647, %v1665
  %vm1949 = vcmp.eq.f32.partialorder %v1948, 8.507059e+37
  %v1950 = vand.u32 %v1665, 2147483648
  %v1951 = vor.u32 1.1754944e-38, %v1950
  %v1952 = vsel %vm1949, %v1951, %v1947
  %v1953 = vmul.f32 1.0, %v1952
  %v1954 = vrcp.pop %v1666
  %v1955 = vmul.f32 %v1666, %v1954
  %v1956 = vsub.f32 1.0, %v1955
  %v1957 = vmul.f32 %v1954, %v1956
  %v1958 = vadd.f32 %v1954, %v1957
  %vm1959 = vweird.f32 %v1666
  %vm1960 = vweird.f32 %v1954
  %vm1961 = vmor %vm1959, %vm1960
  %v1962 = vsel %vm1961, %v1954, %v1958
  %v1963 = vand.u32 2147483647, %v1666
  %vm1964 = vcmp.eq.f32.partialorder %v1963, 8.507059e+37
  %v1965 = vand.u32 %v1666, 2147483648
  %v1966 = vor.u32 1.1754944e-38, %v1965
  %v1967 = vsel %vm1964, %v1966, %v1962
  %v1968 = vmul.f32 1.0, %v1967
  %v1969 = vrcp.pop %v1667
  %v1970 = vmul.f32 %v1667, %v1969
  %v1971 = vsub.f32 1.0, %v1970
  %v1972 = vmul.f32 %v1969, %v1971
  %v1973 = vadd.f32 %v1969, %v1972
  %vm1974 = vweird.f32 %v1667
  %vm1975 = vweird.f32 %v1969
  %vm1976 = vmor %vm1974, %vm1975
  %v1977 = vsel %vm1976, %v1969, %v1973
  %v1978 = vand.u32 2147483647, %v1667
  %vm1979 = vcmp.eq.f32.partialorder %v1978, 8.507059e+37
  %v1980 = vand.u32 %v1667, 2147483648
  %v1981 = vor.u32 1.1754944e-38, %v1980
  %v1982 = vsel %vm1979, %v1981, %v1977
  %v1983 = vmul.f32 1.0, %v1982
  %v1984 = vrcp.pop %v1668
  %v1985 = vmul.f32 %v1668, %v1984
  %v1986 = vsub.f32 1.0, %v1985
  %v1987 = vmul.f32 %v1984, %v1986
  %v1988 = vadd.f32 %v1984, %v1987
  %vm1989 = vweird.f32 %v1668
  %vm1990 = vweird.f32 %v1984
  %vm1991 = vmor %vm1989, %vm1990
  %v1992 = vsel %vm1991, %v1984, %v1988
  %v1993 = vand.u32 2147483647, %v1668
  %vm1994 = vcmp.eq.f32.partialorder %v1993, 8.507059e+37
  %v1995 = vand.u32 %v1668, 2147483648
  %v1996 = vor.u32 1.1754944e-38, %v1995
  %v1997 = vsel %vm1994, %v1996, %v1992
  %v1998 = vmul.f32 1.0, %v1997
  %v1999 = vrcp.pop %v1669
  %v2000 = vmul.f32 %v1669, %v1999
  %v2001 = vsub.f32 1.0, %v2000
  %v2002 = vmul.f32 %v1999, %v2001
  %v2003 = vadd.f32 %v1999, %v2002
  %vm2004 = vweird.f32 %v1669
  %vm2005 = vweird.f32 %v1999
  %vm2006 = vmor %vm2004, %vm2005
  %v2007 = vsel %vm2006, %v1999, %v2003
  %v2008 = vand.u32 2147483647, %v1669
  %vm2009 = vcmp.eq.f32.partialorder %v2008, 8.507059e+37
  %v2010 = vand.u32 %v1669, 2147483648
  %v2011 = vor.u32 1.1754944e-38, %v2010
  %v2012 = vsel %vm2009, %v2011, %v2007
  %v2013 = vmul.f32 1.0, %v2012
  %v2014 = vrcp.pop %v1670
  %v2015 = vmul.f32 %v1670, %v2014
  %v2016 = vsub.f32 1.0, %v2015
  %v2017 = vmul.f32 %v2014, %v2016
  %v2018 = vadd.f32 %v2014, %v2017
  %vm2019 = vweird.f32 %v1670
  %vm2020 = vweird.f32 %v2014
  %vm2021 = vmor %vm2019, %vm2020
  %v2022 = vsel %vm2021, %v2014, %v2018
  %v2023 = vand.u32 2147483647, %v1670
  %vm2024 = vcmp.eq.f32.partialorder %v2023, 8.507059e+37
  %v2025 = vand.u32 %v1670, 2147483648
  %v2026 = vor.u32 1.1754944e-38, %v2025
  %v2027 = vsel %vm2024, %v2026, %v2022
  %v2028 = vmul.f32 1.0, %v2027
  %v2029 = vrcp.pop %v1671
  %v2030 = vmul.f32 %v1671, %v2029
  %v2031 = vsub.f32 1.0, %v2030
  %v2032 = vmul.f32 %v2029, %v2031
  %v2033 = vadd.f32 %v2029, %v2032
  %vm2034 = vweird.f32 %v1671
  %vm2035 = vweird.f32 %v2029
  %vm2036 = vmor %vm2034, %vm2035
  %v2037 = vsel %vm2036, %v2029, %v2033
  %v2038 = vand.u32 2147483647, %v1671
  %vm2039 = vcmp.eq.f32.partialorder %v2038, 8.507059e+37
  %v2040 = vand.u32 %v1671, 2147483648
  %v2041 = vor.u32 1.1754944e-38, %v2040
  %v2042 = vsel %vm2039, %v2041, %v2037
  %v2043 = vmul.f32 1.0, %v2042
  %v2044 = vrcp.pop %v1672
  %v2045 = vmul.f32 %v1672, %v2044
  %v2046 = vsub.f32 1.0, %v2045
  %v2047 = vmul.f32 %v2044, %v2046
  %v2048 = vadd.f32 %v2044, %v2047
  %vm2049 = vweird.f32 %v1672
  %vm2050 = vweird.f32 %v2044
  %vm2051 = vmor %vm2049, %vm2050
  %v2052 = vsel %vm2051, %v2044, %v2048
  %v2053 = vand.u32 2147483647, %v1672
  %vm2054 = vcmp.eq.f32.partialorder %v2053, 8.507059e+37
  %v2055 = vand.u32 %v1672, 2147483648
  %v2056 = vor.u32 1.1754944e-38, %v2055
  %v2057 = vsel %vm2054, %v2056, %v2052
  %v2058 = vmul.f32 1.0, %v2057
  %v2059 = vrcp.pop %v1673
  %v2060 = vmul.f32 %v1673, %v2059
  %v2061 = vsub.f32 1.0, %v2060
  %v2062 = vmul.f32 %v2059, %v2061
  %v2063 = vadd.f32 %v2059, %v2062
  %vm2064 = vweird.f32 %v1673
  %vm2065 = vweird.f32 %v2059
  %vm2066 = vmor %vm2064, %vm2065
  %v2067 = vsel %vm2066, %v2059, %v2063
  %v2068 = vand.u32 2147483647, %v1673
  %vm2069 = vcmp.eq.f32.partialorder %v2068, 8.507059e+37
  %v2070 = vand.u32 %v1673, 2147483648
  %v2071 = vor.u32 1.1754944e-38, %v2070
  %v2072 = vsel %vm2069, %v2071, %v2067
  %v2073 = vmul.f32 1.0, %v2072
  %v2074 = vrcp.pop %v1674
  %v2075 = vmul.f32 %v1674, %v2074
  %v2076 = vsub.f32 1.0, %v2075
  %v2077 = vmul.f32 %v2074, %v2076
  %v2078 = vadd.f32 %v2074, %v2077
  %vm2079 = vweird.f32 %v1674
  %vm2080 = vweird.f32 %v2074
  %vm2081 = vmor %vm2079, %vm2080
  %v2082 = vsel %vm2081, %v2074, %v2078
  %v2083 = vand.u32 2147483647, %v1674
  %vm2084 = vcmp.eq.f32.partialorder %v2083, 8.507059e+37
  %v2085 = vand.u32 %v1674, 2147483648
  %v2086 = vor.u32 1.1754944e-38, %v2085
  %v2087 = vsel %vm2084, %v2086, %v2082
  %v2088 = vmul.f32 1.0, %v2087
  %v2089 = vrcp.pop %v1675
  %v2090 = vmul.f32 %v1675, %v2089
  %v2091 = vsub.f32 1.0, %v2090
  %v2092 = vmul.f32 %v2089, %v2091
  %v2093 = vadd.f32 %v2089, %v2092
  %vm2094 = vweird.f32 %v1675
  %vm2095 = vweird.f32 %v2089
  %vm2096 = vmor %vm2094, %vm2095
  %v2097 = vsel %vm2096, %v2089, %v2093
  %v2098 = vand.u32 2147483647, %v1675
  %vm2099 = vcmp.eq.f32.partialorder %v2098, 8.507059e+37
  %v2100 = vand.u32 %v1675, 2147483648
  %v2101 = vor.u32 1.1754944e-38, %v2100
  %v2102 = vsel %vm2099, %v2101, %v2097
  %v2103 = vmul.f32 1.0, %v2102
  %v2104 = vrcp.pop %v1676
  %v2105 = vmul.f32 %v1676, %v2104
  %v2106 = vsub.f32 1.0, %v2105
  %v2107 = vmul.f32 %v2104, %v2106
  %v2108 = vadd.f32 %v2104, %v2107
  %vm2109 = vweird.f32 %v1676
  %vm2110 = vweird.f32 %v2104
  %vm2111 = vmor %vm2109, %vm2110
  %v2112 = vsel %vm2111, %v2104, %v2108
  %v2113 = vand.u32 2147483647, %v1676
  %vm2114 = vcmp.eq.f32.partialorder %v2113, 8.507059e+37
  %v2115 = vand.u32 %v1676, 2147483648
  %v2116 = vor.u32 1.1754944e-38, %v2115
  %v2117 = vsel %vm2114, %v2116, %v2112
  %v2118 = vmul.f32 1.0, %v2117
  %v2119 = vrcp.pop %v1677
  %v2120 = vmul.f32 %v1677, %v2119
  %v2121 = vsub.f32 1.0, %v2120
  %v2122 = vmul.f32 %v2119, %v2121
  %v2123 = vadd.f32 %v2119, %v2122
  %vm2124 = vweird.f32 %v1677
  %vm2125 = vweird.f32 %v2119
  %vm2126 = vmor %vm2124, %vm2125
  %v2127 = vsel %vm2126, %v2119, %v2123
  %v2128 = vand.u32 2147483647, %v1677
  %vm2129 = vcmp.eq.f32.partialorder %v2128, 8.507059e+37
  %v2130 = vand.u32 %v1677, 2147483648
  %v2131 = vor.u32 1.1754944e-38, %v2130
  %v2132 = vsel %vm2129, %v2131, %v2127
  %v2133 = vmul.f32 1.0, %v2132
  %v2134 = vrcp.pop %v1678
  %v2135 = vmul.f32 %v1678, %v2134
  %v2136 = vsub.f32 1.0, %v2135
  %v2137 = vmul.f32 %v2134, %v2136
  %v2138 = vadd.f32 %v2134, %v2137
  %vm2139 = vweird.f32 %v1678
  %vm2140 = vweird.f32 %v2134
  %vm2141 = vmor %vm2139, %vm2140
  %v2142 = vsel %vm2141, %v2134, %v2138
  %v2143 = vand.u32 2147483647, %v1678
  %vm2144 = vcmp.eq.f32.partialorder %v2143, 8.507059e+37
  %v2145 = vand.u32 %v1678, 2147483648
  %v2146 = vor.u32 1.1754944e-38, %v2145
  %v2147 = vsel %vm2144, %v2146, %v2142
  %v2148 = vmul.f32 1.0, %v2147
  %v2149 = vrcp.pop %v1679
  %v2150 = vmul.f32 %v1679, %v2149
  %v2151 = vsub.f32 1.0, %v2150
  %v2152 = vmul.f32 %v2149, %v2151
  %v2153 = vadd.f32 %v2149, %v2152
  %vm2154 = vweird.f32 %v1679
  %vm2155 = vweird.f32 %v2149
  %vm2156 = vmor %vm2154, %vm2155
  %v2157 = vsel %vm2156, %v2149, %v2153
  %v2158 = vand.u32 2147483647, %v1679
  %vm2159 = vcmp.eq.f32.partialorder %v2158, 8.507059e+37
  %v2160 = vand.u32 %v1679, 2147483648
  %v2161 = vor.u32 1.1754944e-38, %v2160
  %v2162 = vsel %vm2159, %v2161, %v2157
  %v2163 = vmul.f32 1.0, %v2162
  %v2164 = vrcp.pop %v1680
  %v2165 = vmul.f32 %v1680, %v2164
  %v2166 = vsub.f32 1.0, %v2165
  %v2167 = vmul.f32 %v2164, %v2166
  %v2168 = vadd.f32 %v2164, %v2167
  %vm2169 = vweird.f32 %v1680
  %vm2170 = vweird.f32 %v2164
  %vm2171 = vmor %vm2169, %vm2170
  %v2172 = vsel %vm2171, %v2164, %v2168
  %v2173 = vand.u32 2147483647, %v1680
  %vm2174 = vcmp.eq.f32.partialorder %v2173, 8.507059e+37
  %v2175 = vand.u32 %v1680, 2147483648
  %v2176 = vor.u32 1.1754944e-38, %v2175
  %v2177 = vsel %vm2174, %v2176, %v2172
  %v2178 = vmul.f32 1.0, %v2177
  %v2179 = vrcp.pop %v1681
  %v2180 = vmul.f32 %v1681, %v2179
  %v2181 = vsub.f32 1.0, %v2180
  %v2182 = vmul.f32 %v2179, %v2181
  %v2183 = vadd.f32 %v2179, %v2182
  %vm2184 = vweird.f32 %v1681
  %vm2185 = vweird.f32 %v2179
  %vm2186 = vmor %vm2184, %vm2185
  %v2187 = vsel %vm2186, %v2179, %v2183
  %v2188 = vand.u32 2147483647, %v1681
  %vm2189 = vcmp.eq.f32.partialorder %v2188, 8.507059e+37
  %v2190 = vand.u32 %v1681, 2147483648
  %v2191 = vor.u32 1.1754944e-38, %v2190
  %v2192 = vsel %vm2189, %v2191, %v2187
  %v2193 = vmul.f32 1.0, %v2192
  %v2194 = vrcp.pop %v1682
  %v2195 = vmul.f32 %v1682, %v2194
  %v2196 = vsub.f32 1.0, %v2195
  %v2197 = vmul.f32 %v2194, %v2196
  %v2198 = vadd.f32 %v2194, %v2197
  %vm2199 = vweird.f32 %v1682
  %vm2200 = vweird.f32 %v2194
  %vm2201 = vmor %vm2199, %vm2200
  %v2202 = vsel %vm2201, %v2194, %v2198
  %v2203 = vand.u32 2147483647, %v1682
  %vm2204 = vcmp.eq.f32.partialorder %v2203, 8.507059e+37
  %v2205 = vand.u32 %v1682, 2147483648
  %v2206 = vor.u32 1.1754944e-38, %v2205
  %v2207 = vsel %vm2204, %v2206, %v2202
  %v2208 = vmul.f32 1.0, %v2207
  %v2209 = vrcp.pop %v1683
  %v2210 = vmul.f32 %v1683, %v2209
  %v2211 = vsub.f32 1.0, %v2210
  %v2212 = vmul.f32 %v2209, %v2211
  %v2213 = vadd.f32 %v2209, %v2212
  %vm2214 = vweird.f32 %v1683
  %vm2215 = vweird.f32 %v2209
  %vm2216 = vmor %vm2214, %vm2215
  %v2217 = vsel %vm2216, %v2209, %v2213
  %v2218 = vand.u32 2147483647, %v1683
  %vm2219 = vcmp.eq.f32.partialorder %v2218, 8.507059e+37
  %v2220 = vand.u32 %v1683, 2147483648
  %v2221 = vor.u32 1.1754944e-38, %v2220
  %v2222 = vsel %vm2219, %v2221, %v2217
  %v2223 = vmul.f32 1.0, %v2222
  %v2224 = vrcp.pop %v1684
  %v2225 = vmul.f32 %v1684, %v2224
  %v2226 = vsub.f32 1.0, %v2225
  %v2227 = vmul.f32 %v2224, %v2226
  %v2228 = vadd.f32 %v2224, %v2227
  %vm2229 = vweird.f32 %v1684
  %vm2230 = vweird.f32 %v2224
  %vm2231 = vmor %vm2229, %vm2230
  %v2232 = vsel %vm2231, %v2224, %v2228
  %v2233 = vand.u32 2147483647, %v1684
  %vm2234 = vcmp.eq.f32.partialorder %v2233, 8.507059e+37
  %v2235 = vand.u32 %v1684, 2147483648
  %v2236 = vor.u32 1.1754944e-38, %v2235
  %v2237 = vsel %vm2234, %v2236, %v2232
  %v2238 = vmul.f32 1.0, %v2237
  %v2239 = vrcp.pop %v1685
  %v2240 = vmul.f32 %v1685, %v2239
  %v2241 = vsub.f32 1.0, %v2240
  %v2242 = vmul.f32 %v2239, %v2241
  %v2243 = vadd.f32 %v2239, %v2242
  %vm2244 = vweird.f32 %v1685
  %vm2245 = vweird.f32 %v2239
  %vm2246 = vmor %vm2244, %vm2245
  %v2247 = vsel %vm2246, %v2239, %v2243
  %v2248 = vand.u32 2147483647, %v1685
  %vm2249 = vcmp.eq.f32.partialorder %v2248, 8.507059e+37
  %v2250 = vand.u32 %v1685, 2147483648
  %v2251 = vor.u32 1.1754944e-38, %v2250
  %v2252 = vsel %vm2249, %v2251, %v2247
  %v2253 = vmul.f32 1.0, %v2252
  %v2254 = vrcp.pop %v1686
  %v2255 = vmul.f32 %v1686, %v2254
  %v2256 = vsub.f32 1.0, %v2255
  %v2257 = vmul.f32 %v2254, %v2256
  %v2258 = vadd.f32 %v2254, %v2257
  %vm2259 = vweird.f32 %v1686
  %vm2260 = vweird.f32 %v2254
  %vm2261 = vmor %vm2259, %vm2260
  %v2262 = vsel %vm2261, %v2254, %v2258
  %v2263 = vand.u32 2147483647, %v1686
  %vm2264 = vcmp.eq.f32.partialorder %v2263, 8.507059e+37
  %v2265 = vand.u32 %v1686, 2147483648
  %v2266 = vor.u32 1.1754944e-38, %v2265
  %v2267 = vsel %vm2264, %v2266, %v2262
  %v2268 = vmul.f32 1.0, %v2267
  %v2269 = vrcp.pop %v1687
  %v2270 = vmul.f32 %v1687, %v2269
  %v2271 = vsub.f32 1.0, %v2270
  %v2272 = vmul.f32 %v2269, %v2271
  %v2273 = vadd.f32 %v2269, %v2272
  %vm2274 = vweird.f32 %v1687
  %vm2275 = vweird.f32 %v2269
  %vm2276 = vmor %vm2274, %vm2275
  %v2277 = vsel %vm2276, %v2269, %v2273
  %v2278 = vand.u32 2147483647, %v1687
  %vm2279 = vcmp.eq.f32.partialorder %v2278, 8.507059e+37
  %v2280 = vand.u32 %v1687, 2147483648
  %v2281 = vor.u32 1.1754944e-38, %v2280
  %v2282 = vsel %vm2279, %v2281, %v2277
  %v2283 = vmul.f32 1.0, %v2282
  %v2284 = vrcp.pop %v1688
  %v2285 = vmul.f32 %v1688, %v2284
  %v2286 = vsub.f32 1.0, %v2285
  %v2287 = vmul.f32 %v2284, %v2286
  %v2288 = vadd.f32 %v2284, %v2287
  %vm2289 = vweird.f32 %v1688
  %vm2290 = vweird.f32 %v2284
  %vm2291 = vmor %vm2289, %vm2290
  %v2292 = vsel %vm2291, %v2284, %v2288
  %v2293 = vand.u32 2147483647, %v1688
  %vm2294 = vcmp.eq.f32.partialorder %v2293, 8.507059e+37
  %v2295 = vand.u32 %v1688, 2147483648
  %v2296 = vor.u32 1.1754944e-38, %v2295
  %v2297 = vsel %vm2294, %v2296, %v2292
  %v2298 = vmul.f32 1.0, %v2297
  %v2299 = vrcp.pop %v1689
  %v2300 = vmul.f32 %v1689, %v2299
  %v2301 = vsub.f32 1.0, %v2300
  %v2302 = vmul.f32 %v2299, %v2301
  %v2303 = vadd.f32 %v2299, %v2302
  %vm2304 = vweird.f32 %v1689
  %vm2305 = vweird.f32 %v2299
  %vm2306 = vmor %vm2304, %vm2305
  %v2307 = vsel %vm2306, %v2299, %v2303
  %v2308 = vand.u32 2147483647, %v1689
  %vm2309 = vcmp.eq.f32.partialorder %v2308, 8.507059e+37
  %v2310 = vand.u32 %v1689, 2147483648
  %v2311 = vor.u32 1.1754944e-38, %v2310
  %v2312 = vsel %vm2309, %v2311, %v2307
  %v2313 = vmul.f32 1.0, %v2312
  %v2314 = vrcp.pop %v1690
  %v2315 = vmul.f32 %v1690, %v2314
  %v2316 = vsub.f32 1.0, %v2315
  %v2317 = vmul.f32 %v2314, %v2316
  %v2318 = vadd.f32 %v2314, %v2317
  %vm2319 = vweird.f32 %v1690
  %vm2320 = vweird.f32 %v2314
  %vm2321 = vmor %vm2319, %vm2320
  %v2322 = vsel %vm2321, %v2314, %v2318
  %v2323 = vand.u32 2147483647, %v1690
  %vm2324 = vcmp.eq.f32.partialorder %v2323, 8.507059e+37
  %v2325 = vand.u32 %v1690, 2147483648
  %v2326 = vor.u32 1.1754944e-38, %v2325
  %v2327 = vsel %vm2324, %v2326, %v2322
  %v2328 = vmul.f32 1.0, %v2327
  %v2329 = vrcp.pop %v1691
  %v2330 = vmul.f32 %v1691, %v2329
  %v2331 = vsub.f32 1.0, %v2330
  %v2332 = vmul.f32 %v2329, %v2331
  %v2333 = vadd.f32 %v2329, %v2332
  %vm2334 = vweird.f32 %v1691
  %vm2335 = vweird.f32 %v2329
  %vm2336 = vmor %vm2334, %vm2335
  %v2337 = vsel %vm2336, %v2329, %v2333
  %v2338 = vand.u32 2147483647, %v1691
  %vm2339 = vcmp.eq.f32.partialorder %v2338, 8.507059e+37
  %v2340 = vand.u32 %v1691, 2147483648
  %v2341 = vor.u32 1.1754944e-38, %v2340
  %v2342 = vsel %vm2339, %v2341, %v2337
  %v2343 = vmul.f32 1.0, %v2342
  %v2344 = vrcp.pop %v1692
  %v2345 = vmul.f32 %v1692, %v2344
  %v2346 = vsub.f32 1.0, %v2345
  %v2347 = vmul.f32 %v2344, %v2346
  %v2348 = vadd.f32 %v2344, %v2347
  %vm2349 = vweird.f32 %v1692
  %vm2350 = vweird.f32 %v2344
  %vm2351 = vmor %vm2349, %vm2350
  %v2352 = vsel %vm2351, %v2344, %v2348
  %v2353 = vand.u32 2147483647, %v1692
  %vm2354 = vcmp.eq.f32.partialorder %v2353, 8.507059e+37
  %v2355 = vand.u32 %v1692, 2147483648
  %v2356 = vor.u32 1.1754944e-38, %v2355
  %v2357 = vsel %vm2354, %v2356, %v2352
  %v2358 = vmul.f32 1.0, %v2357
  %v2359 = vrcp.pop %v1693
  %v2360 = vmul.f32 %v1693, %v2359
  %v2361 = vsub.f32 1.0, %v2360
  %v2362 = vmul.f32 %v2359, %v2361
  %v2363 = vadd.f32 %v2359, %v2362
  %vm2364 = vweird.f32 %v1693
  %vm2365 = vweird.f32 %v2359
  %vm2366 = vmor %vm2364, %vm2365
  %v2367 = vsel %vm2366, %v2359, %v2363
  %v2368 = vand.u32 2147483647, %v1693
  %vm2369 = vcmp.eq.f32.partialorder %v2368, 8.507059e+37
  %v2370 = vand.u32 %v1693, 2147483648
  %v2371 = vor.u32 1.1754944e-38, %v2370
  %v2372 = vsel %vm2369, %v2371, %v2367
  %v2373 = vmul.f32 1.0, %v2372
  %v2374 = vrcp.pop %v1694
  %v2375 = vmul.f32 %v1694, %v2374
  %v2376 = vsub.f32 1.0, %v2375
  %v2377 = vmul.f32 %v2374, %v2376
  %v2378 = vadd.f32 %v2374, %v2377
  %vm2379 = vweird.f32 %v1694
  %vm2380 = vweird.f32 %v2374
  %vm2381 = vmor %vm2379, %vm2380
  %v2382 = vsel %vm2381, %v2374, %v2378
  %v2383 = vand.u32 2147483647, %v1694
  %vm2384 = vcmp.eq.f32.partialorder %v2383, 8.507059e+37
  %v2385 = vand.u32 %v1694, 2147483648
  %v2386 = vor.u32 1.1754944e-38, %v2385
  %v2387 = vsel %vm2384, %v2386, %v2382
  %v2388 = vmul.f32 1.0, %v2387
  %v2389 = vrcp.pop %v1695
  %v2390 = vmul.f32 %v1695, %v2389
  %v2391 = vsub.f32 1.0, %v2390
  %v2392 = vmul.f32 %v2389, %v2391
  %v2393 = vadd.f32 %v2389, %v2392
  %vm2394 = vweird.f32 %v1695
  %vm2395 = vweird.f32 %v2389
  %vm2396 = vmor %vm2394, %vm2395
  %v2397 = vsel %vm2396, %v2389, %v2393
  %v2398 = vand.u32 2147483647, %v1695
  %vm2399 = vcmp.eq.f32.partialorder %v2398, 8.507059e+37
  %v2400 = vand.u32 %v1695, 2147483648
  %v2401 = vor.u32 1.1754944e-38, %v2400
  %v2402 = vsel %vm2399, %v2401, %v2397
  %v2403 = vmul.f32 1.0, %v2402
  %v2404 = vrcp.pop %v1696
  %v2405 = vmul.f32 %v1696, %v2404
  %v2406 = vsub.f32 1.0, %v2405
  %v2407 = vmul.f32 %v2404, %v2406
  %v2408 = vadd.f32 %v2404, %v2407
  %vm2409 = vweird.f32 %v1696
  %vm2410 = vweird.f32 %v2404
  %vm2411 = vmor %vm2409, %vm2410
  %v2412 = vsel %vm2411, %v2404, %v2408
  %v2413 = vand.u32 2147483647, %v1696
  %vm2414 = vcmp.eq.f32.partialorder %v2413, 8.507059e+37
  %v2415 = vand.u32 %v1696, 2147483648
  %v2416 = vor.u32 1.1754944e-38, %v2415
  %v2417 = vsel %vm2414, %v2416, %v2412
  %v2418 = vmul.f32 1.0, %v2417
  %v2419 = vrcp.pop %v1697
  %v2420 = vmul.f32 %v1697, %v2419
  %v2421 = vsub.f32 1.0, %v2420
  %v2422 = vmul.f32 %v2419, %v2421
  %v2423 = vadd.f32 %v2419, %v2422
  %vm2424 = vweird.f32 %v1697
  %vm2425 = vweird.f32 %v2419
  %vm2426 = vmor %vm2424, %vm2425
  %v2427 = vsel %vm2426, %v2419, %v2423
  %v2428 = vand.u32 2147483647, %v1697
  %vm2429 = vcmp.eq.f32.partialorder %v2428, 8.507059e+37
  %v2430 = vand.u32 %v1697, 2147483648
  %v2431 = vor.u32 1.1754944e-38, %v2430
  %v2432 = vsel %vm2429, %v2431, %v2427
  %v2433 = vmul.f32 1.0, %v2432
  %v2434 = vrcp.pop %v1698
  %v2435 = vmul.f32 %v1698, %v2434
  %v2436 = vsub.f32 1.0, %v2435
  %v2437 = vmul.f32 %v2434, %v2436
  %v2438 = vadd.f32 %v2434, %v2437
  %vm2439 = vweird.f32 %v1698
  %vm2440 = vweird.f32 %v2434
  %vm2441 = vmor %vm2439, %vm2440
  %v2442 = vsel %vm2441, %v2434, %v2438
  %v2443 = vand.u32 2147483647, %v1698
  %vm2444 = vcmp.eq.f32.partialorder %v2443, 8.507059e+37
  %v2445 = vand.u32 %v1698, 2147483648
  %v2446 = vor.u32 1.1754944e-38, %v2445
  %v2447 = vsel %vm2444, %v2446, %v2442
  %v2448 = vmul.f32 1.0, %v2447
  %v2449 = vrcp.pop %v1699
  %v2450 = vmul.f32 %v1699, %v2449
  %v2451 = vsub.f32 1.0, %v2450
  %v2452 = vmul.f32 %v2449, %v2451
  %v2453 = vadd.f32 %v2449, %v2452
  %vm2454 = vweird.f32 %v1699
  %vm2455 = vweird.f32 %v2449
  %vm2456 = vmor %vm2454, %vm2455
  %v2457 = vsel %vm2456, %v2449, %v2453
  %v2458 = vand.u32 2147483647, %v1699
  %vm2459 = vcmp.eq.f32.partialorder %v2458, 8.507059e+37
  %v2460 = vand.u32 %v1699, 2147483648
  %v2461 = vor.u32 1.1754944e-38, %v2460
  %v2462 = vsel %vm2459, %v2461, %v2457
  %v2463 = vmul.f32 1.0, %v2462
  %v2464 = vrcp.pop %v1700
  %v2465 = vmul.f32 %v1700, %v2464
  %v2466 = vsub.f32 1.0, %v2465
  %v2467 = vmul.f32 %v2464, %v2466
  %v2468 = vadd.f32 %v2464, %v2467
  %vm2469 = vweird.f32 %v1700
  %vm2470 = vweird.f32 %v2464
  %vm2471 = vmor %vm2469, %vm2470
  %v2472 = vsel %vm2471, %v2464, %v2468
  %v2473 = vand.u32 2147483647, %v1700
  %vm2474 = vcmp.eq.f32.partialorder %v2473, 8.507059e+37
  %v2475 = vand.u32 %v1700, 2147483648
  %v2476 = vor.u32 1.1754944e-38, %v2475
  %v2477 = vsel %vm2474, %v2476, %v2472
  %v2478 = vmul.f32 1.0, %v2477
  %v2479 = vrcp.pop %v1701
  %v2480 = vmul.f32 %v1701, %v2479
  %v2481 = vsub.f32 1.0, %v2480
  %v2482 = vmul.f32 %v2479, %v2481
  %v2483 = vadd.f32 %v2479, %v2482
  %vm2484 = vweird.f32 %v1701
  %vm2485 = vweird.f32 %v2479
  %vm2486 = vmor %vm2484, %vm2485
  %v2487 = vsel %vm2486, %v2479, %v2483
  %v2488 = vand.u32 2147483647, %v1701
  %vm2489 = vcmp.eq.f32.partialorder %v2488, 8.507059e+37
  %v2490 = vand.u32 %v1701, 2147483648
  %v2491 = vor.u32 1.1754944e-38, %v2490
  %v2492 = vsel %vm2489, %v2491, %v2487
  %v2493 = vmul.f32 1.0, %v2492
  %v2494 = vrcp.pop %v1702
  %v2495 = vmul.f32 %v1702, %v2494
  %v2496 = vsub.f32 1.0, %v2495
  %v2497 = vmul.f32 %v2494, %v2496
  %v2498 = vadd.f32 %v2494, %v2497
  %vm2499 = vweird.f32 %v1702
  %vm2500 = vweird.f32 %v2494
  %vm2501 = vmor %vm2499, %vm2500
  %v2502 = vsel %vm2501, %v2494, %v2498
  %v2503 = vand.u32 2147483647, %v1702
  %vm2504 = vcmp.eq.f32.partialorder %v2503, 8.507059e+37
  %v2505 = vand.u32 %v1702, 2147483648
  %v2506 = vor.u32 1.1754944e-38, %v2505
  %v2507 = vsel %vm2504, %v2506, %v2502
  %v2508 = vmul.f32 1.0, %v2507
  %v2509 = vrcp.pop %v1703
  %v2510 = vmul.f32 %v1703, %v2509
  %v2511 = vsub.f32 1.0, %v2510
  %v2512 = vmul.f32 %v2509, %v2511
  %v2513 = vadd.f32 %v2509, %v2512
  %vm2514 = vweird.f32 %v1703
  %vm2515 = vweird.f32 %v2509
  %vm2516 = vmor %vm2514, %vm2515
  %v2517 = vsel %vm2516, %v2509, %v2513
  %v2518 = vand.u32 2147483647, %v1703
  %vm2519 = vcmp.eq.f32.partialorder %v2518, 8.507059e+37
  %v2520 = vand.u32 %v1703, 2147483648
  %v2521 = vor.u32 1.1754944e-38, %v2520
  %v2522 = vsel %vm2519, %v2521, %v2517
  %v2523 = vmul.f32 1.0, %v2522
  %v2524 = vrcp.pop %v1704
  %v2525 = vmul.f32 %v1704, %v2524
  %v2526 = vsub.f32 1.0, %v2525
  %v2527 = vmul.f32 %v2524, %v2526
  %v2528 = vadd.f32 %v2524, %v2527
  %vm2529 = vweird.f32 %v1704
  %vm2530 = vweird.f32 %v2524
  %vm2531 = vmor %vm2529, %vm2530
  %v2532 = vsel %vm2531, %v2524, %v2528
  %v2533 = vand.u32 2147483647, %v1704
  %vm2534 = vcmp.eq.f32.partialorder %v2533, 8.507059e+37
  %v2535 = vand.u32 %v1704, 2147483648
  %v2536 = vor.u32 1.1754944e-38, %v2535
  %v2537 = vsel %vm2534, %v2536, %v2532
  %v2538 = vmul.f32 1.0, %v2537
  %v2539 = vrcp.pop %v1705
  %v2540 = vmul.f32 %v1705, %v2539
  %v2541 = vsub.f32 1.0, %v2540
  %v2542 = vmul.f32 %v2539, %v2541
  %v2543 = vadd.f32 %v2539, %v2542
  %vm2544 = vweird.f32 %v1705
  %vm2545 = vweird.f32 %v2539
  %vm2546 = vmor %vm2544, %vm2545
  %v2547 = vsel %vm2546, %v2539, %v2543
  %v2548 = vand.u32 2147483647, %v1705
  %vm2549 = vcmp.eq.f32.partialorder %v2548, 8.507059e+37
  %v2550 = vand.u32 %v1705, 2147483648
  %v2551 = vor.u32 1.1754944e-38, %v2550
  %v2552 = vsel %vm2549, %v2551, %v2547
  %v2553 = vmul.f32 1.0, %v2552
  %v2554 = vrcp.pop %v1706
  %v2555 = vmul.f32 %v1706, %v2554
  %v2556 = vsub.f32 1.0, %v2555
  %v2557 = vmul.f32 %v2554, %v2556
  %v2558 = vadd.f32 %v2554, %v2557
  %vm2559 = vweird.f32 %v1706
  %vm2560 = vweird.f32 %v2554
  %vm2561 = vmor %vm2559, %vm2560
  %v2562 = vsel %vm2561, %v2554, %v2558
  %v2563 = vand.u32 2147483647, %v1706
  %vm2564 = vcmp.eq.f32.partialorder %v2563, 8.507059e+37
  %v2565 = vand.u32 %v1706, 2147483648
  %v2566 = vor.u32 1.1754944e-38, %v2565
  %v2567 = vsel %vm2564, %v2566, %v2562
  %v2568 = vmul.f32 1.0, %v2567
  %v2569 = vrcp.pop %v1707
  %v2570 = vmul.f32 %v1707, %v2569
  %v2571 = vsub.f32 1.0, %v2570
  %v2572 = vmul.f32 %v2569, %v2571
  %v2573 = vadd.f32 %v2569, %v2572
  %vm2574 = vweird.f32 %v1707
  %vm2575 = vweird.f32 %v2569
  %vm2576 = vmor %vm2574, %vm2575
  %v2577 = vsel %vm2576, %v2569, %v2573
  %v2578 = vand.u32 2147483647, %v1707
  %vm2579 = vcmp.eq.f32.partialorder %v2578, 8.507059e+37
  %v2580 = vand.u32 %v1707, 2147483648
  %v2581 = vor.u32 1.1754944e-38, %v2580
  %v2582 = vsel %vm2579, %v2581, %v2577
  %v2583 = vmul.f32 1.0, %v2582
  %v2584 = vrcp.pop %v1708
  %v2585 = vmul.f32 %v1708, %v2584
  %v2586 = vsub.f32 1.0, %v2585
  %v2587 = vmul.f32 %v2584, %v2586
  %v2588 = vadd.f32 %v2584, %v2587
  %vm2589 = vweird.f32 %v1708
  %vm2590 = vweird.f32 %v2584
  %vm2591 = vmor %vm2589, %vm2590
  %v2592 = vsel %vm2591, %v2584, %v2588
  %v2593 = vand.u32 2147483647, %v1708
  %vm2594 = vcmp.eq.f32.partialorder %v2593, 8.507059e+37
  %v2595 = vand.u32 %v1708, 2147483648
  %v2596 = vor.u32 1.1754944e-38, %v2595
  %v2597 = vsel %vm2594, %v2596, %v2592
  %v2598 = vmul.f32 1.0, %v2597
  %v2599 = vrcp.pop %v1709
  %v2600 = vmul.f32 %v1709, %v2599
  %v2601 = vsub.f32 1.0, %v2600
  %v2602 = vmul.f32 %v2599, %v2601
  %v2603 = vadd.f32 %v2599, %v2602
  %vm2604 = vweird.f32 %v1709
  %vm2605 = vweird.f32 %v2599
  %vm2606 = vmor %vm2604, %vm2605
  %v2607 = vsel %vm2606, %v2599, %v2603
  %v2608 = vand.u32 2147483647, %v1709
  %vm2609 = vcmp.eq.f32.partialorder %v2608, 8.507059e+37
  %v2610 = vand.u32 %v1709, 2147483648
  %v2611 = vor.u32 1.1754944e-38, %v2610
  %v2612 = vsel %vm2609, %v2611, %v2607
  %v2613 = vmul.f32 1.0, %v2612
  %v2614 = vrcp.pop %v1710
  %v2615 = vmul.f32 %v1710, %v2614
  %v2616 = vsub.f32 1.0, %v2615
  %v2617 = vmul.f32 %v2614, %v2616
  %v2618 = vadd.f32 %v2614, %v2617
  %vm2619 = vweird.f32 %v1710
  %vm2620 = vweird.f32 %v2614
  %vm2621 = vmor %vm2619, %vm2620
  %v2622 = vsel %vm2621, %v2614, %v2618
  %v2623 = vand.u32 2147483647, %v1710
  %vm2624 = vcmp.eq.f32.partialorder %v2623, 8.507059e+37
  %v2625 = vand.u32 %v1710, 2147483648
  %v2626 = vor.u32 1.1754944e-38, %v2625
  %v2627 = vsel %vm2624, %v2626, %v2622
  %v2628 = vmul.f32 1.0, %v2627
  %v2629 = vrcp.pop %v1711
  %v2630 = vmul.f32 %v1711, %v2629
  %v2631 = vsub.f32 1.0, %v2630
  %v2632 = vmul.f32 %v2629, %v2631
  %v2633 = vadd.f32 %v2629, %v2632
  %vm2634 = vweird.f32 %v1711
  %vm2635 = vweird.f32 %v2629
  %vm2636 = vmor %vm2634, %vm2635
  %v2637 = vsel %vm2636, %v2629, %v2633
  %v2638 = vand.u32 2147483647, %v1711
  %vm2639 = vcmp.eq.f32.partialorder %v2638, 8.507059e+37
  %v2640 = vand.u32 %v1711, 2147483648
  %v2641 = vor.u32 1.1754944e-38, %v2640
  %v2642 = vsel %vm2639, %v2641, %v2637
  %v2643 = vmul.f32 1.0, %v2642
  %v2644 = vrcp.pop %v1712
  %v2645 = vmul.f32 %v1712, %v2644
  %v2646 = vsub.f32 1.0, %v2645
  %v2647 = vmul.f32 %v2644, %v2646
  %v2648 = vadd.f32 %v2644, %v2647
  %vm2649 = vweird.f32 %v1712
  %vm2650 = vweird.f32 %v2644
  %vm2651 = vmor %vm2649, %vm2650
  %v2652 = vsel %vm2651, %v2644, %v2648
  %v2653 = vand.u32 2147483647, %v1712
  %vm2654 = vcmp.eq.f32.partialorder %v2653, 8.507059e+37
  %v2655 = vand.u32 %v1712, 2147483648
  %v2656 = vor.u32 1.1754944e-38, %v2655
  %v2657 = vsel %vm2654, %v2656, %v2652
  %v2658 = vmul.f32 1.0, %v2657
  %v2659 = vrcp.pop %v1713
  %v2660 = vmul.f32 %v1713, %v2659
  %v2661 = vsub.f32 1.0, %v2660
  %v2662 = vmul.f32 %v2659, %v2661
  %v2663 = vadd.f32 %v2659, %v2662
  %vm2664 = vweird.f32 %v1713
  %vm2665 = vweird.f32 %v2659
  %vm2666 = vmor %vm2664, %vm2665
  %v2667 = vsel %vm2666, %v2659, %v2663
  %v2668 = vand.u32 2147483647, %v1713
  %vm2669 = vcmp.eq.f32.partialorder %v2668, 8.507059e+37
  %v2670 = vand.u32 %v1713, 2147483648
  %v2671 = vor.u32 1.1754944e-38, %v2670
  %v2672 = vsel %vm2669, %v2671, %v2667
  %v2673 = vmul.f32 1.0, %v2672
  %vm2674 = vcmask 15360
  %2675 = vst.msk [vmem:[%s7] sm:$0xff] %vm2674, %v1728
  %2676 = vst.msk [vmem:[%s7 + $0x8] sm:$0xff] %vm2674, %v1743
  %2677 = vst.msk [vmem:[%s7 + $0x10] sm:$0xff] %vm2674, %v1758
  %2678 = vst.msk [vmem:[%s7 + $0x18] sm:$0xff] %vm2674, %v1773
  %2679 = vst.msk [vmem:[%s7 + $0x20] sm:$0xff] %vm2674, %v1788
  %2680 = vst.msk [vmem:[%s7 + $0x28] sm:$0xff] %vm2674, %v1803
  %2681 = vst.msk [vmem:[%s7 + $0x30] sm:$0xff] %vm2674, %v1818
  %2682 = vst.msk [vmem:[%s7 + $0x38] sm:$0xff] %vm2674, %v1833
  %2683 = vst.msk [vmem:[%s7 + $0x40] sm:$0xff] %vm2674, %v1848
  %2684 = vst.msk [vmem:[%s7 + $0x48] sm:$0xff] %vm2674, %v1863
  %2685 = vst.msk [vmem:[%s7 + $0x50] sm:$0xff] %vm2674, %v1878
  %2686 = vst.msk [vmem:[%s7 + $0x58] sm:$0xff] %vm2674, %v1893
  %2687 = vst.msk [vmem:[%s7 + $0x60] sm:$0xff] %vm2674, %v1908
  %2688 = vst.msk [vmem:[%s7 + $0x68] sm:$0xff] %vm2674, %v1923
  %2689 = vst.msk [vmem:[%s7 + $0x70] sm:$0xff] %vm2674, %v1938
  %2690 = vst.msk [vmem:[%s7 + $0x78] sm:$0xff] %vm2674, %v1953
  %2691 = vst.msk [vmem:[%s7 + $0x80] sm:$0xff] %vm2674, %v1968
  %2692 = vst.msk [vmem:[%s7 + $0x88] sm:$0xff] %vm2674, %v1983
  %2693 = vst.msk [vmem:[%s7 + $0x90] sm:$0xff] %vm2674, %v1998
  %2694 = vst.msk [vmem:[%s7 + $0x98] sm:$0xff] %vm2674, %v2013
  %2695 = vst.msk [vmem:[%s7 + $0xa0] sm:$0xff] %vm2674, %v2028
  %2696 = vst.msk [vmem:[%s7 + $0xa8] sm:$0xff] %vm2674, %v2043
  %2697 = vst.msk [vmem:[%s7 + $0xb0] sm:$0xff] %vm2674, %v2058
  %2698 = vst.msk [vmem:[%s7 + $0xb8] sm:$0xff] %vm2674, %v2073
  %2699 = vst.msk [vmem:[%s7 + $0xc0] sm:$0xff] %vm2674, %v2088
  %2700 = vst.msk [vmem:[%s7 + $0xc8] sm:$0xff] %vm2674, %v2103
  %2701 = vst.msk [vmem:[%s7 + $0xd0] sm:$0xff] %vm2674, %v2118
  %2702 = vst.msk [vmem:[%s7 + $0xd8] sm:$0xff] %vm2674, %v2133
  %2703 = vst.msk [vmem:[%s7 + $0xe0] sm:$0xff] %vm2674, %v2148
  %2704 = vst.msk [vmem:[%s7 + $0xe8] sm:$0xff] %vm2674, %v2163
  %2705 = vst.msk [vmem:[%s7 + $0xf0] sm:$0xff] %vm2674, %v2178
  %2706 = vst.msk [vmem:[%s7 + $0xf8] sm:$0xff] %vm2674, %v2193
  %2707 = vst.msk [vmem:[%s7 + $0x100] sm:$0xff] %vm2674, %v2208
  %2708 = vst.msk [vmem:[%s7 + $0x108] sm:$0xff] %vm2674, %v2223
  %2709 = vst.msk [vmem:[%s7 + $0x110] sm:$0xff] %vm2674, %v2238
  %2710 = vst.msk [vmem:[%s7 + $0x118] sm:$0xff] %vm2674, %v2253
  %2711 = vst.msk [vmem:[%s7 + $0x120] sm:$0xff] %vm2674, %v2268
  %2712 = vst.msk [vmem:[%s7 + $0x128] sm:$0xff] %vm2674, %v2283
  %2713 = vst.msk [vmem:[%s7 + $0x130] sm:$0xff] %vm2674, %v2298
  %2714 = vst.msk [vmem:[%s7 + $0x138] sm:$0xff] %vm2674, %v2313
  %2715 = vst.msk [vmem:[%s7 + $0x140] sm:$0xff] %vm2674, %v2328
  %2716 = vst.msk [vmem:[%s7 + $0x148] sm:$0xff] %vm2674, %v2343
  %2717 = vst.msk [vmem:[%s7 + $0x150] sm:$0xff] %vm2674, %v2358
  %2718 = vst.msk [vmem:[%s7 + $0x158] sm:$0xff] %vm2674, %v2373
  %2719 = vst.msk [vmem:[%s7 + $0x160] sm:$0xff] %vm2674, %v2388
  %2720 = vst.msk [vmem:[%s7 + $0x168] sm:$0xff] %vm2674, %v2403
  %2721 = vst.msk [vmem:[%s7 + $0x170] sm:$0xff] %vm2674, %v2418
  %2722 = vst.msk [vmem:[%s7 + $0x178] sm:$0xff] %vm2674, %v2433
  %2723 = vst.msk [vmem:[%s7 + $0x180] sm:$0xff] %vm2674, %v2448
  %2724 = vst.msk [vmem:[%s7 + $0x188] sm:$0xff] %vm2674, %v2463
  %2725 = vst.msk [vmem:[%s7 + $0x190] sm:$0xff] %vm2674, %v2478
  %2726 = vst.msk [vmem:[%s7 + $0x198] sm:$0xff] %vm2674, %v2493
  %2727 = vst.msk [vmem:[%s7 + $0x1a0] sm:$0xff] %vm2674, %v2508
  %2728 = vst.msk [vmem:[%s7 + $0x1a8] sm:$0xff] %vm2674, %v2523
  %2729 = vst.msk [vmem:[%s7 + $0x1b0] sm:$0xff] %vm2674, %v2538
  %2730 = vst.msk [vmem:[%s7 + $0x1b8] sm:$0xff] %vm2674, %v2553
  %2731 = vst.msk [vmem:[%s7 + $0x1c0] sm:$0xff] %vm2674, %v2568
  %2732 = vst.msk [vmem:[%s7 + $0x1c8] sm:$0xff] %vm2674, %v2583
  %2733 = vst.msk [vmem:[%s7 + $0x1d0] sm:$0xff] %vm2674, %v2598
  %2734 = vst.msk [vmem:[%s7 + $0x1d8] sm:$0xff] %vm2674, %v2613
  %2735 = vst.msk [vmem:[%s7 + $0x1e0] sm:$0xff] %vm2674, %v2628
  %2736 = vst.msk [vmem:[%s7 + $0x1e8] sm:$0xff] %vm2674, %v2643
  %2737 = vst.msk [vmem:[%s7 + $0x1f0] sm:$0xff] %vm2674, %v2658
  %2738 = vst.msk [vmem:[%s7 + $0x1f8] sm:$0xff] %vm2674, %v2673
  // Predicated region
  $region30: #{tpu_custom_call.1} parent=0 // pred_check
    _
  $region31: #{tpu_custom_call.1} parent=0 // pred_check_branch
    %2740 = sbr.rel (0) target = $region33
  $region32: #{tpu_custom_call.1} parent=0 // pred_region
    _
  $region33: #{tpu_custom_call.1} parent=0 // pred_fallthru
    _
  // Predicated region
  $region34: #{tpu_custom_call.1} parent=0 // pred_check
    _
  $region35: #{tpu_custom_call.1} parent=0 // pred_check_branch
    %2742 = sbr.rel (0) target = $region37
  $region36: #{tpu_custom_call.1} parent=0 // pred_region
    _
  $region37: #{tpu_custom_call.1} parent=0 // pred_fallthru
    _

</llo_original>
